<compile_context>
chip_gen: v7x
topology: tpu7x:2x2x1
jax: 0.10.0
libtpu: 0.0.40
codegen_flags: <defaults>
</compile_context>

<pallas_src>
import functools

import jax
import jax.numpy as jnp
import numpy as np
from jax.experimental import pallas as pl
from jax.experimental.pallas import tpu as pltpu


def _cross_attention_kernel(xT_ref, xkvT_ref, mask_ref, wqT_ref, wkT_ref,
                            wvT_ref, wpT_ref, o_ref, *, head_dim,
                            approx_recip):
    # Per grid program g (head group):
    #   xT_ref, xkvT_ref : (C, B*N)   bf16  (full, shared by all programs)
    #   mask_ref         : (B*N, B*N) f32   additive causal + same-batch mask
    #   wqT/wkT/wvT_ref  : (Cg, C)    bf16  rows = this group's (head, d) feats
    #   wpT_ref          : (1, C, Cg) bf16  this group's slice of Wp^T
    #   o_ref            : (1, C, B*N) f32  partial projected output (host sums)
    Cg = wqT_ref.shape[0]
    BN = xT_ref.shape[1]
    D = head_dim
    Hg = Cg // D

    xT = xT_ref[...]                       # (C, BN) bf16
    xkvT = xkvT_ref[...]                   # (C, BN) bf16

    # Lane-dense fused projections: 3 MXU dots total.
    qT = jnp.dot(wqT_ref[...], xT, preferred_element_type=jnp.float32)    # (Cg, BN)
    kT = jnp.dot(wkT_ref[...], xkvT, preferred_element_type=jnp.float32)  # (Cg, BN)
    vT = jnp.dot(wvT_ref[...], xkvT, preferred_element_type=jnp.float32)  # (Cg, BN)

    # Head split = sublane split (rows are head-major).  Only Q needs a
    # minor-dims transpose so the contraction dim (D) lands on lanes.
    qh = jnp.swapaxes(qT.reshape(Hg, D, BN), 1, 2).astype(jnp.bfloat16)   # (Hg, BN, D)
    kh = kT.reshape(Hg, D, BN).astype(jnp.bfloat16)                       # (Hg, D, BN)
    vh = vT.reshape(Hg, D, BN).astype(jnp.bfloat16)                       # (Hg, D, BN)

    # Scores for all heads of this group in one batched matmul; scale was
    # folded into Wq host-side; additive mask enforces causality and zeroes
    # cross-batch (flattened-row) pairs.
    s = jnp.einsum('hnd,hdm->hnm', qh, kh,
                   preferred_element_type=jnp.float32)                    # (Hg, BN, BN)
    s = s + mask_ref[...]

    # Softmax batched over every (head, query-row) at once.
    p = jnp.exp(s - jnp.max(s, axis=-1, keepdims=True))
    l = jnp.sum(p, axis=-1, keepdims=True)                                # (Hg, BN, 1)
    if approx_recip:
        p = p * pl.reciprocal(l, approx=True)      # rides the EUP slot
    else:
        p = p / l
    p = p.astype(jnp.bfloat16)

    # P @ V, emitted directly in "(head, d) on sublanes" layout so that the
    # concat-heads slab is a free reshape.
    o = jnp.einsum('hdm,hnm->hdn', vh, p,
                   preferred_element_type=jnp.float32)                    # (Hg, D, BN)
    o_catT = o.reshape(Cg, BN).astype(jnp.bfloat16)                       # (Cg, BN)

    # Fused output projection: one K=Cg dot.  Bias + cross-group sum on host.
    o_ref[0] = jnp.dot(wpT_ref[0], o_catT, preferred_element_type=jnp.float32)


def _num_head_groups():
    """2 head groups on dual-TensorCore chips (v7x); 1 on v5e/v6e (single TC)."""
    try:
        kind = jax.devices()[0].device_kind.lower()
    except Exception:
        return 1
    return 2 if ("v7" in kind or "7x" in kind) else 1


def cross_attention(x, x_kv, wq, wkv, wp, bp, *, num_heads,
                    head_groups=None, approx_recip=True):
    B, N, C = x.shape
    assert x_kv.shape == x.shape, "module requires matching (B, N, C) for x_kv"
    assert C % num_heads == 0
    H = num_heads
    D = C // H
    BN = B * N
    scale = D ** -0.5

    if head_groups is None:
        head_groups = _num_head_groups()
    if H % head_groups != 0:
        head_groups = 1
    G = head_groups
    Cg = C // G

    bf16 = jnp.bfloat16

    # ---- host-side (free) layout prep ----
    # Feature-major activations: (C, B*N) so per-head splits are sublane splits.
    xT = x.reshape(BN, C).T.astype(bf16)
    xkvT = x_kv.reshape(BN, C).T.astype(bf16)

    # Lane-dense, pre-transposed weights.  Fold softmax scale into Wq.
    wqT = (wq * scale).T                                   # (C, C), rows head-major
    wkv3 = wkv.reshape(C, H, 2 * D)                        # de-interleave K / V
    wkT = wkv3[:, :, :D].reshape(C, C).T                   # (C, C)
    wvT = wkv3[:, :, D:].reshape(C, C).T                   # (C, C)
    wpT = wp.T                                             # (C_out, C_in)
    wpT_g = wpT.reshape(C, G, Cg).transpose(1, 0, 2)       # (G, C, Cg) per-group cols
    wqT, wkT, wvT, wpT_g = (w.astype(bf16) for w in (wqT, wkT, wvT, wpT_g))

    # Additive causal + same-batch mask over flattened (b, n) rows/cols
    # (hoisted: computed once, applied with a single add in-kernel).
    r = jnp.arange(BN)
    same_batch = (r[:, None] // N) == (r[None, :] // N)
    causal = r[None, :] <= r[:, None]
    mask_add = jnp.where(same_batch & causal, 0.0, -1e30).astype(jnp.float32)

    kernel = functools.partial(_cross_attention_kernel, head_dim=D,
                               approx_recip=approx_recip)

    parts = pl.pallas_call(
        kernel,
        out_shape=jax.ShapeDtypeStruct((G, C, BN), jnp.float32),
        grid=(G,),
        in_specs=[
            pl.BlockSpec((C, BN), lambda g: (0, 0)),        # x^T
            pl.BlockSpec((C, BN), lambda g: (0, 0)),        # x_kv^T
            pl.BlockSpec((BN, BN), lambda g: (0, 0)),       # additive mask
            pl.BlockSpec((Cg, C), lambda g: (g, 0)),        # Wq^T (scaled)
            pl.BlockSpec((Cg, C), lambda g: (g, 0)),        # Wk^T (de-interleaved)
            pl.BlockSpec((Cg, C), lambda g: (g, 0)),        # Wv^T (de-interleaved)
            pl.BlockSpec((1, C, Cg), lambda g: (g, 0, 0)),  # Wp^T group slab
        ],
        out_specs=pl.BlockSpec((1, C, BN), lambda g: (g, 0, 0)),
        compiler_params=pltpu.CompilerParams(
            dimension_semantics=("parallel",),
            vmem_limit_bytes=32 * 1024 * 1024),
    )(xT, xkvT, mask_add, wqT, wkT, wvT, wpT_g)

    # Cross-head-group partial sum + bias, back to (B, N, C).
    outT = parts.sum(axis=0) + bp[:, None].astype(jnp.float32)   # (C, BN)
    return outT.T.reshape(B, N, C).astype(x.dtype)


def cross_attention_reference(x, x_kv, wq, wkv, wp, bp, *, num_heads):
    """Pure-JAX f32 reference mirroring the PyTorch forward."""
    HIGH = jax.lax.Precision.HIGHEST
    B, N, C = x.shape
    D = C // num_heads
    scale = D ** -0.5
    q = (x @ wq).reshape(B, N, num_heads, D).transpose(0, 2, 1, 3)
    kv = (x_kv @ wkv).reshape(B, N, num_heads, 2 * D).transpose(0, 2, 1, 3)
    k, v = kv[..., :D], kv[..., D:]
    s = jnp.einsum('bhnd,bhmd->bhnm', q, k, precision=HIGH) * scale
    mask = jnp.tril(jnp.ones((N, N), dtype=bool))
    s = jnp.where(mask, s, -jnp.inf)
    p = jax.nn.softmax(s, axis=-1)
    o = jnp.einsum('bhnm,bhmd->bhnd', p, v, precision=HIGH)
    o = o.transpose(0, 2, 1, 3).reshape(B, N, C)
    return o @ wp + bp


if __name__ == "__main__":
    B, N, C, H = 2, 8, 64, 8   # dim=64, num_heads=8 -> head_dim=8

    key = jax.random.PRNGKey(0)
    kx, kxkv, kq, kkv, kp, kb = jax.random.split(key, 6)

    x = jax.random.normal(kx, (B, N, C), dtype=jnp.float32)
    x_kv = jax.random.normal(kxkv, (B, N, C), dtype=jnp.float32)

    # Deterministic synthetic parameters; stored as (in, out) i.e. W_pt.T.
    wq = 0.05 * jax.random.normal(kq, (C, C), dtype=jnp.float32)
    wkv = 0.05 * jax.random.normal(kkv, (C, 2 * C), dtype=jnp.float32)
    wp = 0.05 * jax.random.normal(kp, (C, C), dtype=jnp.float32)
    bp = 0.01 * jax.random.normal(kb, (C,), dtype=jnp.float32)

    # TODO(synk): attn_drop / proj_drop are eval-mode identities (p=0.0) and
    # qk_norm defaults to nn.Identity, so they are intentionally not emitted.
    out = cross_attention(x, x_kv, wq, wkv, wp, bp, num_heads=H)
    out = jax.block_until_ready(out)

    ref = cross_attention_reference(x, x_kv, wq, wkv, wp, bp, num_heads=H)
    # bf16 MXU operands -> compare against the f32 golden with bf16-level tol.
    np.testing.assert_allclose(np.asarray(out), np.asarray(ref),
                               rtol=2e-2, atol=2e-2)

    print("KERNEL_OK")
</pallas_src>

<mosaic_0001>
module attributes {stable_mosaic.version = 11 : i64} {
  func.func @_cross_attention_kernel(%arg0: i32, %arg1: memref<64x16xbf16, #tpu.memory_space<vmem>>, %arg2: memref<64x16xbf16, #tpu.memory_space<vmem>>, %arg3: memref<16x16xf32, #tpu.memory_space<vmem>>, %arg4: memref<64x64xbf16, #tpu.memory_space<vmem>>, %arg5: memref<64x64xbf16, #tpu.memory_space<vmem>>, %arg6: memref<64x64xbf16, #tpu.memory_space<vmem>>, %arg7: memref<1x64x64xbf16, #tpu.memory_space<vmem>>, %arg8: memref<1x64x16xf32, #tpu.memory_space<vmem>>) attributes {dimension_semantics = [#tpu.dimension_semantics<parallel>], iteration_bounds = array<i64: 1>, scalar_prefetch = 0 : i64, scratch_operands = 0 : i64, tpu.core_type = #tpu.core_type<tc>, window_params = [{pipeline_mode = #tpu.pipeline_mode<synchronous>, transform_indices = @transform_0, window_bounds = array<i64: 64, 16>}, {pipeline_mode = #tpu.pipeline_mode<synchronous>, transform_indices = @transform_1, window_bounds = array<i64: 64, 16>}, {pipeline_mode = #tpu.pipeline_mode<synchronous>, transform_indices = @transform_2, window_bounds = array<i64: 16, 16>}, {transform_indices = @transform_3, window_bounds = array<i64: 64, 64>}, {transform_indices = @transform_4, window_bounds = array<i64: 64, 64>}, {transform_indices = @transform_5, window_bounds = array<i64: 64, 64>}, {transform_indices = @transform_6, window_bounds = array<i64: 1, 64, 64>}, {transform_indices = @transform_7, window_bounds = array<i64: 1, 64, 16>}]} {
    %c0 = arith.constant 0 : index
    %c0_0 = arith.constant 0 : index
    %0 = vector.load %arg1[%c0, %c0_0] : memref<64x16xbf16, #tpu.memory_space<vmem>>, vector<64x16xbf16>
    %c0_1 = arith.constant 0 : index
    %c0_2 = arith.constant 0 : index
    %1 = vector.load %arg2[%c0_1, %c0_2] : memref<64x16xbf16, #tpu.memory_space<vmem>>, vector<64x16xbf16>
    %c0_3 = arith.constant 0 : index
    %c0_4 = arith.constant 0 : index
    %2 = vector.load %arg4[%c0_3, %c0_4] : memref<64x64xbf16, #tpu.memory_space<vmem>>, vector<64x64xbf16>
    %cst = arith.constant dense<0.000000e+00> : vector<64x16xf32>
    %3 = tpu.matmul %2, %0, %cst {dimension_numbers = #tpu.dot_dimension_numbers<[1], [0], [0], [1], [0, 0, 1, 1], [], []>} : vector<64x64xbf16>, vector<64x16xbf16>, vector<64x16xf32> -> vector<64x16xf32>
    %c0_5 = arith.constant 0 : index
    %c0_6 = arith.constant 0 : index
    %4 = vector.load %arg5[%c0_5, %c0_6] : memref<64x64xbf16, #tpu.memory_space<vmem>>, vector<64x64xbf16>
    %cst_7 = arith.constant dense<0.000000e+00> : vector<64x16xf32>
    %5 = tpu.matmul %4, %1, %cst_7 {dimension_numbers = #tpu.dot_dimension_numbers<[1], [0], [0], [1], [0, 0, 1, 1], [], []>} : vector<64x64xbf16>, vector<64x16xbf16>, vector<64x16xf32> -> vector<64x16xf32>
    %c0_8 = arith.constant 0 : index
    %c0_9 = arith.constant 0 : index
    %6 = vector.load %arg6[%c0_8, %c0_9] : memref<64x64xbf16, #tpu.memory_space<vmem>>, vector<64x64xbf16>
    %cst_10 = arith.constant dense<0.000000e+00> : vector<64x16xf32>
    %7 = tpu.matmul %6, %1, %cst_10 {dimension_numbers = #tpu.dot_dimension_numbers<[1], [0], [0], [1], [0, 0, 1, 1], [], []>} : vector<64x64xbf16>, vector<64x16xbf16>, vector<64x16xf32> -> vector<64x16xf32>
    %8 = vector.shape_cast %3 : vector<64x16xf32> to vector<8x8x16xf32>
    %9 = tpu.transpose %8, [0, 2, 1] : vector<8x8x16xf32> -> vector<8x16x8xf32>
    %10 = arith.truncf %9 : vector<8x16x8xf32> to vector<8x16x8xbf16>
    %11 = vector.shape_cast %5 : vector<64x16xf32> to vector<8x8x16xf32>
    %12 = arith.truncf %11 : vector<8x8x16xf32> to vector<8x8x16xbf16>
    %13 = vector.shape_cast %7 : vector<64x16xf32> to vector<8x8x16xf32>
    %14 = arith.truncf %13 : vector<8x8x16xf32> to vector<8x8x16xbf16>
    "tpu.trace_start"() <{level = 10 : i32, message = "hnd,hdm->hnm"}> : () -> ()
    %cst_11 = arith.constant dense<0.000000e+00> : vector<8x16x16xf32>
    %15 = tpu.matmul %10, %12, %cst_11 {dimension_numbers = #tpu.dot_dimension_numbers<[2], [1], [1], [2], [0, 0, 0, 1, 1, 2], [0], [0]>} : vector<8x16x8xbf16>, vector<8x8x16xbf16>, vector<8x16x16xf32> -> vector<8x16x16xf32>
    "tpu.trace_stop"() : () -> ()
    %c0_12 = arith.constant 0 : index
    %c0_13 = arith.constant 0 : index
    %16 = vector.load %arg3[%c0_12, %c0_13] : memref<16x16xf32, #tpu.memory_space<vmem>>, vector<16x16xf32>
    %17 = vector.shape_cast %16 : vector<16x16xf32> to vector<1x16x16xf32>
    %18 = vector.broadcast %17 : vector<1x16x16xf32> to vector<8x16x16xf32>
    %19 = arith.addf %15, %18 : vector<8x16x16xf32>
    %cst_14 = arith.constant dense<0xFF800000> : vector<8x16xf32>
    %20 = vector.multi_reduction <maximumf>, %19, %cst_14 [2] : vector<8x16x16xf32> to vector<8x16xf32>
    %21 = vector.shape_cast %20 : vector<8x16xf32> to vector<8x16x1xf32>
    %22 = vector.broadcast %21 : vector<8x16x1xf32> to vector<8x16x16xf32>
    %23 = arith.subf %19, %22 : vector<8x16x16xf32>
    %24 = math.exp %23 : vector<8x16x16xf32>
    %cst_15 = arith.constant dense<0.000000e+00> : vector<8x16xf32>
    %25 = vector.multi_reduction <add>, %24, %cst_15 [2] : vector<8x16x16xf32> to vector<8x16xf32>
    %26 = vector.shape_cast %25 : vector<8x16xf32> to vector<8x16x1xf32>
    %27 = tpu.reciprocal %26 {approx = true} : vector<8x16x1xf32> -> vector<8x16x1xf32>
    %28 = vector.broadcast %27 : vector<8x16x1xf32> to vector<8x16x16xf32>
    %29 = arith.mulf %24, %28 : vector<8x16x16xf32>
    %30 = arith.truncf %29 : vector<8x16x16xf32> to vector<8x16x16xbf16>
    "tpu.trace_start"() <{level = 10 : i32, message = "hdm,hnm->hdn"}> : () -> ()
    %cst_16 = arith.constant dense<0.000000e+00> : vector<8x8x16xf32>
    %31 = tpu.matmul %14, %30, %cst_16 {dimension_numbers = #tpu.dot_dimension_numbers<[2], [2], [1], [1], [0, 0, 0, 1, 1, 1], [0], [0]>} : vector<8x8x16xbf16>, vector<8x16x16xbf16>, vector<8x8x16xf32> -> vector<8x8x16xf32>
    "tpu.trace_stop"() : () -> ()
    %32 = vector.shape_cast %31 : vector<8x8x16xf32> to vector<64x16xf32>
    %33 = arith.truncf %32 : vector<64x16xf32> to vector<64x16xbf16>
    %c0_17 = arith.constant 0 : index
    %c0_18 = arith.constant 0 : index
    %c0_19 = arith.constant 0 : index
    %34 = vector.load %arg7[%c0_17, %c0_18, %c0_19] : memref<1x64x64xbf16, #tpu.memory_space<vmem>>, vector<1x64x64xbf16>
    %35 = vector.shape_cast %34 : vector<1x64x64xbf16> to vector<64x64xbf16>
    %cst_20 = arith.constant dense<0.000000e+00> : vector<64x16xf32>
    %36 = tpu.matmul %35, %33, %cst_20 {dimension_numbers = #tpu.dot_dimension_numbers<[1], [0], [0], [1], [0, 0, 1, 1], [], []>} : vector<64x64xbf16>, vector<64x16xbf16>, vector<64x16xf32> -> vector<64x16xf32>
    %c0_21 = arith.constant 0 : index
    %c0_22 = arith.constant 0 : index
    %c0_23 = arith.constant 0 : index
    %37 = vector.load %arg8[%c0_21, %c0_22, %c0_23] : memref<1x64x16xf32, #tpu.memory_space<vmem>>, vector<1x64x16xf32>
    %38 = vector.shape_cast %37 : vector<1x64x16xf32> to vector<64x16xf32>
    %39 = vector.shape_cast %36 : vector<64x16xf32> to vector<1x64x16xf32>
    tpu.vector_store %arg8[%c0_21, %c0_22, %c0_23], %39 {strides = array<i32>} : memref<1x64x16xf32, #tpu.memory_space<vmem>>, vector<1x64x16xf32>,
    return
  }
  func.func @transform_0(%arg0: i32) -> (i32, i32) {
    %c0_i32 = arith.constant 0 : i32
    %c0_i32_0 = arith.constant 0 : i32
    %c0_i32_1 = arith.constant 0 : i32
    return %c0_i32, %c0_i32_0 : i32, i32
  }
  func.func @transform_1(%arg0: i32) -> (i32, i32) {
    %c0_i32 = arith.constant 0 : i32
    %c0_i32_0 = arith.constant 0 : i32
    %c0_i32_1 = arith.constant 0 : i32
    return %c0_i32, %c0_i32_0 : i32, i32
  }
  func.func @transform_2(%arg0: i32) -> (i32, i32) {
    %c0_i32 = arith.constant 0 : i32
    %c0_i32_0 = arith.constant 0 : i32
    %c0_i32_1 = arith.constant 0 : i32
    return %c0_i32, %c0_i32_0 : i32, i32
  }
  func.func @transform_3(%arg0: i32) -> (i32, i32) {
    %c0_i32 = arith.constant 0 : i32
    %c0_i32_0 = arith.constant 0 : i32
    return %arg0, %c0_i32 : i32, i32
  }
  func.func @transform_4(%arg0: i32) -> (i32, i32) {
    %c0_i32 = arith.constant 0 : i32
    %c0_i32_0 = arith.constant 0 : i32
    return %arg0, %c0_i32 : i32, i32
  }
  func.func @transform_5(%arg0: i32) -> (i32, i32) {
    %c0_i32 = arith.constant 0 : i32
    %c0_i32_0 = arith.constant 0 : i32
    return %arg0, %c0_i32 : i32, i32
  }
  func.func @transform_6(%arg0: i32) -> (i32, i32, i32) {
    %c0_i32 = arith.constant 0 : i32
    %c0_i32_0 = arith.constant 0 : i32
    %c0_i32_1 = arith.constant 0 : i32
    return %arg0, %c0_i32, %c0_i32_0 : i32, i32, i32
  }
  func.func @transform_7(%arg0: i32) -> (i32, i32, i32) {
    %c0_i32 = arith.constant 0 : i32
    %c0_i32_0 = arith.constant 0 : i32
    %c0_i32_1 = arith.constant 0 : i32
    return %arg0, %c0_i32, %c0_i32_0 : i32, i32, i32
  }
}

</mosaic_0001>

<llo_original>
// kernel: tpu_custom_call.1
$region0: #{tpu_custom_call.1}
  #allocation0 [shape = 'u32[]', space=smem, size = 0x4, offset = 0x4, fixed_abs, tag = 'smem constant byte address 0x4 - core index']
  #allocation1 [shape = 'u32[144,128]{1,0:T(1,128)}', space=vmem, size = 0x12000, scoped, tag = 'internal scratch']
  %s0 = inlined_call_operand.vmem [shape: bf16[64,16], index: 0, kind: input, shape index: {}]
  %s1 = inlined_call_operand.vmem [shape: bf16[64,16], index: 1, kind: input, shape index: {}]
  %s2 = inlined_call_operand.hbm [shape: f32[16,16], index: 2, kind: input, shape index: {}]
  %s3 = inlined_call_operand.vmem [shape: bf16[64,64], index: 3, kind: input, shape index: {}]
  %s4 = inlined_call_operand.vmem [shape: bf16[64,64], index: 4, kind: input, shape index: {}]
  %s5 = inlined_call_operand.vmem [shape: bf16[64,64], index: 5, kind: input, shape index: {}]
  %s6 = inlined_call_operand.hbm [shape: bf16[1,64,64], index: 6, kind: input, shape index: {}]
  %s7 = inlined_call_operand.vmem [shape: f32[1,64,16], index: 7, kind: output, shape index: {}]
  %s8 = sld [smem:[#allocation0]]
  $region46: #{tpu_custom_call.1} parent=0
    _
  %s10 = ssub.s32 1, %s8
  %s11 = scalar_select 0, %s10, %s8
  $region1: #{tpu_custom_call.1} parent=0
    #allocation2 [shape = 'u8[8192]{0}', space=vmem, size = 0x2000, scoped, tag = 'input window, operand 2, single buffered']
    #allocation3 [shape = 's32[1]{0}', space=sflag, size = 0x4, scoped, tag = 'scoped memory for tpu_custom_call.1']
    #allocation4 [shape = 'u8[16384]{0}', space=vmem, size = 0x4000, scoped, tag = 'input window, operand 6, single buffered']
    #allocation5 [shape = 's32[1]{0}', space=sflag, size = 0x4, scoped, tag = 'scoped memory for tpu_custom_call.1']
    %12 = vsyncpa [#allocation3], 0
    %13 = vsyncpa [#allocation5], 0
    // Predicated region
    $region2: #{tpu_custom_call.1} parent=1 // pred_check
      _
    $region3: #{tpu_custom_call.1} parent=1 // pred_check_branch
      %15 = sbr.rel (0) target = $region5
    $region4: #{tpu_custom_call.1} parent=1 // pred_region
      _
    $region5: #{tpu_custom_call.1} parent=1 // pred_fallthru
      _
    // Predicated region
    $region6: #{tpu_custom_call.1} parent=1 // pred_check
      _
    $region7: #{tpu_custom_call.1} parent=1 // pred_check_branch
      %17 = sbr.rel (0) target = $region9
    $region8: #{tpu_custom_call.1} parent=1 // pred_region
      _
    $region9: #{tpu_custom_call.1} parent=1 // pred_fallthru
      _
    // Predicated region
    $region10: #{tpu_custom_call.1} parent=1 // pred_check
      _
    $region11: #{tpu_custom_call.1} parent=1 // pred_check_branch
      %19 = sbr.rel (0) target = $region13
    $region12: #{tpu_custom_call.1} parent=1 // pred_region
      %s21 = ssub.s32 256, 256
      %22 = vsyncadd [#allocation3], %s21
      %s23 = sshll.u32 [#allocation2], 4
      %s24 = int_to_ptr.vmem [resolvable:$true] %s23
      %29 = dma.hbm_to_vmem [thread:$0]  %s2, 256, %s24, [#allocation3], 128, 128, 8
    $region13: #{tpu_custom_call.1} parent=1 // pred_fallthru
      _
    // Predicated region
    $region14: #{tpu_custom_call.1} parent=1 // pred_check
      _
    $region15: #{tpu_custom_call.1} parent=1 // pred_check_branch
      %31 = sbr.rel (0) target = $region17
    $region16: #{tpu_custom_call.1} parent=1 // pred_region
      _
    $region17: #{tpu_custom_call.1} parent=1 // pred_fallthru
      _
    // Predicated region
    $region18: #{tpu_custom_call.1} parent=1 // pred_check
      _
    $region19: #{tpu_custom_call.1} parent=1 // pred_check_branch
      %33 = sbr.rel (0) target = $region21
    $region20: #{tpu_custom_call.1} parent=1 // pred_region
      _
    $region21: #{tpu_custom_call.1} parent=1 // pred_fallthru
      _
    // Predicated region
    $region22: #{tpu_custom_call.1} parent=1 // pred_check
      _
    $region23: #{tpu_custom_call.1} parent=1 // pred_check_branch
      %35 = sbr.rel (0) target = $region25
    $region24: #{tpu_custom_call.1} parent=1 // pred_region
      _
    $region25: #{tpu_custom_call.1} parent=1 // pred_fallthru
      _
    // Predicated region
    $region26: #{tpu_custom_call.1} parent=1 // pred_check
      _
    $region27: #{tpu_custom_call.1} parent=1 // pred_check_branch
      %37 = sbr.rel (0) target = $region29
    $region28: #{tpu_custom_call.1} parent=1 // pred_region
      %s39 = ssub.s32 512, 512
      %40 = vsyncadd [#allocation5], %s39
      %s41 = sshll.u32 [#allocation4], 4
      %s42 = int_to_ptr.vmem [resolvable:$true] %s41
      %47 = dma.hbm_to_vmem [thread:$0]  %s6, 512, %s42, [#allocation5], 64, 64, 4
    $region29: #{tpu_custom_call.1} parent=1 // pred_fallthru
      _
    // Predicated region
    $region30: #{tpu_custom_call.1} parent=1 // pred_check
      _
    $region31: #{tpu_custom_call.1} parent=1 // pred_check_branch
      %49 = sbr.rel (0) target = $region33
    $region32: #{tpu_custom_call.1} parent=1 // pred_region
      %50 = dma.done [#allocation3], 256
    $region33: #{tpu_custom_call.1} parent=1 // pred_fallthru
      _
    // Predicated region
    $region34: #{tpu_custom_call.1} parent=1 // pred_check
      _
    $region35: #{tpu_custom_call.1} parent=1 // pred_check_branch
      %52 = sbr.rel (0) target = $region37
    $region36: #{tpu_custom_call.1} parent=1 // pred_region
      %53 = dma.done [#allocation5], 512
    $region37: #{tpu_custom_call.1} parent=1 // pred_fallthru
      _
    %v55 = vld [vmem:[%s0] sm:$0xf]
    %v56 = vld [vmem:[%s0 + $0x4] sm:$0xf]
    %v57 = vld [vmem:[%s0 + $0x8] sm:$0xf]
    %v58 = vld [vmem:[%s0 + $0xc] sm:$0xf]
    %v59 = vld [vmem:[%s0 + $0x10] sm:$0xf]
    %v60 = vld [vmem:[%s0 + $0x14] sm:$0xf]
    %v61 = vld [vmem:[%s0 + $0x18] sm:$0xf]
    %v62 = vld [vmem:[%s0 + $0x1c] sm:$0xf]
    %v63 = vld [vmem:[%s1] sm:$0xf]
    %v64 = vld [vmem:[%s1 + $0x4] sm:$0xf]
    %v65 = vld [vmem:[%s1 + $0x8] sm:$0xf]
    %v66 = vld [vmem:[%s1 + $0xc] sm:$0xf]
    %v67 = vld [vmem:[%s1 + $0x10] sm:$0xf]
    %v68 = vld [vmem:[%s1 + $0x14] sm:$0xf]
    %v69 = vld [vmem:[%s1 + $0x18] sm:$0xf]
    %v70 = vld [vmem:[%s1 + $0x1c] sm:$0xf]
    %v71 = vld [vmem:[%s3] sm:$0xf]
    %v72 = vld [vmem:[%s3 + $0x4] sm:$0xf]
    %v73 = vld [vmem:[%s3 + $0x8] sm:$0xf]
    %v74 = vld [vmem:[%s3 + $0xc] sm:$0xf]
    %v75 = vld [vmem:[%s3 + $0x10] sm:$0xf]
    %v76 = vld [vmem:[%s3 + $0x14] sm:$0xf]
    %v77 = vld [vmem:[%s3 + $0x18] sm:$0xf]
    %v78 = vld [vmem:[%s3 + $0x1c] sm:$0xf]
    %v87 = vunpack.c.l.b16 %v71
    %v88 = vunpack.c.l.b16 %v72
    %v89 = vunpack.c.l.b16 %v73
    %v90 = vunpack.c.l.b16 %v74
    %v91 = vunpack.c.l.b16 %v75
    %v92 = vunpack.c.l.b16 %v76
    %v93 = vunpack.c.l.b16 %v77
    %v94 = vunpack.c.l.b16 %v78
    %v95 = vpack.c.b16 %v88, %v87
    %v96 = vpack.c.b16 %v90, %v89
    %v97 = vpack.c.b16 %v92, %v91
    %v98 = vpack.c.b16 %v94, %v93
    %v107 = vunpack.c.l.b16 %v55
    %v108 = vunpack.c.l.b16 %v56
    %v109 = vunpack.c.l.b16 %v57
    %v110 = vunpack.c.l.b16 %v58
    %v111 = vunpack.c.l.b16 %v59
    %v112 = vunpack.c.l.b16 %v60
    %v113 = vunpack.c.l.b16 %v61
    %v114 = vunpack.c.l.b16 %v62
    %v115 = vpack.c.b16 %v108, %v107
    %v116 = vpack.c.b16 %v110, %v109
    %v117 = vpack.c.b16 %v112, %v111
    %v118 = vpack.c.b16 %v114, %v113
    %vm123 = vcmask 523264
    %v125 = vsel %vm123, %v95, 0
    %v128 = vsel %vm123, %v96, 0
    %v131 = vsel %vm123, %v97, 0
    %v134 = vsel %vm123, %v98, 0
    %136 = vmatprep.subr.bf16.mxu0 0
    %137 = vmatpush1.bf16.msra.mxu0 %v115
    %138 = vmatprep.subr.bf16.mxu0 0
    %139 = vmatpush1.bf16.msra.mxu0 %v116
    %140 = vmatprep.subr.bf16.mxu0 0
    %141 = vmatpush1.bf16.msra.mxu0 %v117
    %142 = vmatprep.subr.bf16.mxu0 0
    %143 = vmatpush1.bf16.msra.mxu0 %v118
    %144 = vmatprep.subr.bf16.mxu0 0
    %145 = vmatpush1.bf16.msra.mxu0 0
    %146 = vmatprep.subr.bf16.mxu0 0
    %147 = vmatpush1.bf16.msra.mxu0 0
    %148 = vmatprep.subr.bf16.mxu0 0
    %149 = vmatpush1.bf16.msra.mxu0 0
    %150 = vmatprep.subr.bf16.mxu0 0
    %151 = vmatpush1.bf16.msra.mxu0 0
    %152 = vmatprep.subr.bf16.mxu0 0
    %153 = vmatpush1.bf16.msra.mxu0 0
    %154 = vmatprep.subr.bf16.mxu0 0
    %155 = vmatpush1.bf16.msra.mxu0 0
    %156 = vmatprep.subr.bf16.mxu0 0
    %157 = vmatpush1.bf16.msra.mxu0 0
    %158 = vmatprep.subr.bf16.mxu0 0
    %159 = vmatpush1.bf16.msra.mxu0 0
    %160 = vmatprep.subr.bf16.mxu0 0
    %161 = vmatpush1.bf16.msra.mxu0 0
    %162 = vmatprep.subr.bf16.mxu0 0
    %163 = vmatpush1.bf16.msra.mxu0 0
    %164 = vmatprep.subr.bf16.mxu0 0
    %165 = vmatpush1.bf16.msra.mxu0 0
    %166 = vmatprep.subr.bf16.mxu0 0
    %167 = vmatpush1.bf16.msra.mxu0 0
    %168 = vmatprep.mubr.bf16.mxu0 0
    %169 = vmatmul.mubr.bf16.gmra.mrb[0].mxu0 %v125
    %v170 = vpop.f32.mrb[0].mxu0
    %v171 = vadd.f32 0.0, %v170
    %v172 = vpop.f32.mrb[0].mxu0
    %v173 = vpop.f32.mrb[0].mxu0
    %v174 = vadd.f32 0.0, %v173
    %v175 = vpop.f32.mrb[0].mxu0
    %176 = vmatprep.mubr.bf16.mxu0 0
    %177 = vmatmul.mubr.bf16.gmra.mrb[0].mxu0 %v128
    %v178 = vpop.f32.mrb[0].mxu0
    %v179 = vadd.f32 0.0, %v178
    %v180 = vpop.f32.mrb[0].mxu0
    %v181 = vpop.f32.mrb[0].mxu0
    %v182 = vadd.f32 0.0, %v181
    %v183 = vpop.f32.mrb[0].mxu0
    %184 = vmatprep.mubr.bf16.mxu0 0
    %185 = vmatmul.mubr.bf16.gmra.mrb[0].mxu0 %v131
    %v186 = vpop.f32.mrb[0].mxu0
    %v187 = vadd.f32 0.0, %v186
    %v188 = vpop.f32.mrb[0].mxu0
    %v189 = vpop.f32.mrb[0].mxu0
    %v190 = vadd.f32 0.0, %v189
    %v191 = vpop.f32.mrb[0].mxu0
    %192 = vmatprep.mubr.bf16.mxu0 0
    %193 = vmatmul.mubr.bf16.gmra.mrb[0].mxu0 %v134
    %v194 = vpop.f32.mrb[0].mxu0
    %v195 = vadd.f32 0.0, %v194
    %v196 = vpop.f32.mrb[0].mxu0
    %v197 = vpop.f32.mrb[0].mxu0
    %v198 = vadd.f32 0.0, %v197
    %v199 = vpop.f32.mrb[0].mxu0
    %200 = vdwg.mxu0
    %v201 = vld [vmem:[%s4] sm:$0xf]
    %v202 = vld [vmem:[%s4 + $0x4] sm:$0xf]
    %v203 = vld [vmem:[%s4 + $0x8] sm:$0xf]
    %v204 = vld [vmem:[%s4 + $0xc] sm:$0xf]
    %v205 = vld [vmem:[%s4 + $0x10] sm:$0xf]
    %v206 = vld [vmem:[%s4 + $0x14] sm:$0xf]
    %v207 = vld [vmem:[%s4 + $0x18] sm:$0xf]
    %v208 = vld [vmem:[%s4 + $0x1c] sm:$0xf]
    %v217 = vunpack.c.l.b16 %v201
    %v218 = vunpack.c.l.b16 %v202
    %v219 = vunpack.c.l.b16 %v203
    %v220 = vunpack.c.l.b16 %v204
    %v221 = vunpack.c.l.b16 %v205
    %v222 = vunpack.c.l.b16 %v206
    %v223 = vunpack.c.l.b16 %v207
    %v224 = vunpack.c.l.b16 %v208
    %v225 = vpack.c.b16 %v218, %v217
    %v226 = vpack.c.b16 %v220, %v219
    %v227 = vpack.c.b16 %v222, %v221
    %v228 = vpack.c.b16 %v224, %v223
    %v237 = vunpack.c.l.b16 %v63
    %v238 = vunpack.c.l.b16 %v64
    %v239 = vunpack.c.l.b16 %v65
    %v240 = vunpack.c.l.b16 %v66
    %v241 = vunpack.c.l.b16 %v67
    %v242 = vunpack.c.l.b16 %v68
    %v243 = vunpack.c.l.b16 %v69
    %v244 = vunpack.c.l.b16 %v70
    %v245 = vpack.c.b16 %v238, %v237
    %v246 = vpack.c.b16 %v240, %v239
    %v247 = vpack.c.b16 %v242, %v241
    %v248 = vpack.c.b16 %v244, %v243
    %v254 = vsel %vm123, %v225, 0
    %v257 = vsel %vm123, %v226, 0
    %v260 = vsel %vm123, %v227, 0
    %v263 = vsel %vm123, %v228, 0
    %265 = vmatprep.subr.bf16.mxu0 0
    %266 = vmatpush1.bf16.msra.mxu0 %v245
    %267 = vmatprep.subr.bf16.mxu0 0
    %268 = vmatpush1.bf16.msra.mxu0 %v246
    %269 = vmatprep.subr.bf16.mxu0 0
    %270 = vmatpush1.bf16.msra.mxu0 %v247
    %271 = vmatprep.subr.bf16.mxu0 0
    %272 = vmatpush1.bf16.msra.mxu0 %v248
    %273 = vmatprep.subr.bf16.mxu0 0
    %274 = vmatpush1.bf16.msra.mxu0 0
    %275 = vmatprep.subr.bf16.mxu0 0
    %276 = vmatpush1.bf16.msra.mxu0 0
    %277 = vmatprep.subr.bf16.mxu0 0
    %278 = vmatpush1.bf16.msra.mxu0 0
    %279 = vmatprep.subr.bf16.mxu0 0
    %280 = vmatpush1.bf16.msra.mxu0 0
    %281 = vmatprep.subr.bf16.mxu0 0
    %282 = vmatpush1.bf16.msra.mxu0 0
    %283 = vmatprep.subr.bf16.mxu0 0
    %284 = vmatpush1.bf16.msra.mxu0 0
    %285 = vmatprep.subr.bf16.mxu0 0
    %286 = vmatpush1.bf16.msra.mxu0 0
    %287 = vmatprep.subr.bf16.mxu0 0
    %288 = vmatpush1.bf16.msra.mxu0 0
    %289 = vmatprep.subr.bf16.mxu0 0
    %290 = vmatpush1.bf16.msra.mxu0 0
    %291 = vmatprep.subr.bf16.mxu0 0
    %292 = vmatpush1.bf16.msra.mxu0 0
    %293 = vmatprep.subr.bf16.mxu0 0
    %294 = vmatpush1.bf16.msra.mxu0 0
    %295 = vmatprep.subr.bf16.mxu0 0
    %296 = vmatpush1.bf16.msra.mxu0 0
    %297 = vmatprep.mubr.bf16.mxu0 0
    %298 = vmatmul.mubr.bf16.gmra.mrb[0].mxu0 %v254
    %v299 = vpop.f32.mrb[0].mxu0
    %v300 = vadd.f32 0.0, %v299
    %v301 = vpop.f32.mrb[0].mxu0
    %v302 = vpop.f32.mrb[0].mxu0
    %v303 = vadd.f32 0.0, %v302
    %v304 = vpop.f32.mrb[0].mxu0
    %305 = vmatprep.mubr.bf16.mxu0 0
    %306 = vmatmul.mubr.bf16.gmra.mrb[0].mxu0 %v257
    %v307 = vpop.f32.mrb[0].mxu0
    %v308 = vadd.f32 0.0, %v307
    %v309 = vpop.f32.mrb[0].mxu0
    %v310 = vpop.f32.mrb[0].mxu0
    %v311 = vadd.f32 0.0, %v310
    %v312 = vpop.f32.mrb[0].mxu0
    %313 = vmatprep.mubr.bf16.mxu0 0
    %314 = vmatmul.mubr.bf16.gmra.mrb[0].mxu0 %v260
    %v315 = vpop.f32.mrb[0].mxu0
    %v316 = vadd.f32 0.0, %v315
    %v317 = vpop.f32.mrb[0].mxu0
    %v318 = vpop.f32.mrb[0].mxu0
    %v319 = vadd.f32 0.0, %v318
    %v320 = vpop.f32.mrb[0].mxu0
    %321 = vmatprep.mubr.bf16.mxu0 0
    %322 = vmatmul.mubr.bf16.gmra.mrb[0].mxu0 %v263
    %v323 = vpop.f32.mrb[0].mxu0
    %v324 = vadd.f32 0.0, %v323
    %v325 = vpop.f32.mrb[0].mxu0
    %v326 = vpop.f32.mrb[0].mxu0
    %v327 = vadd.f32 0.0, %v326
    %v328 = vpop.f32.mrb[0].mxu0
    %329 = vdwg.mxu0
    %v330 = vld [vmem:[%s5] sm:$0xf]
    %v331 = vld [vmem:[%s5 + $0x4] sm:$0xf]
    %v332 = vld [vmem:[%s5 + $0x8] sm:$0xf]
    %v333 = vld [vmem:[%s5 + $0xc] sm:$0xf]
    %v334 = vld [vmem:[%s5 + $0x10] sm:$0xf]
    %v335 = vld [vmem:[%s5 + $0x14] sm:$0xf]
    %v336 = vld [vmem:[%s5 + $0x18] sm:$0xf]
    %v337 = vld [vmem:[%s5 + $0x1c] sm:$0xf]
    %v346 = vunpack.c.l.b16 %v330
    %v347 = vunpack.c.l.b16 %v331
    %v348 = vunpack.c.l.b16 %v332
    %v349 = vunpack.c.l.b16 %v333
    %v350 = vunpack.c.l.b16 %v334
    %v351 = vunpack.c.l.b16 %v335
    %v352 = vunpack.c.l.b16 %v336
    %v353 = vunpack.c.l.b16 %v337
    %v354 = vpack.c.b16 %v347, %v346
    %v355 = vpack.c.b16 %v349, %v348
    %v356 = vpack.c.b16 %v351, %v350
    %v357 = vpack.c.b16 %v353, %v352
    %v359 = vsel %vm123, %v354, 0
    %v362 = vsel %vm123, %v355, 0
    %v365 = vsel %vm123, %v356, 0
    %v368 = vsel %vm123, %v357, 0
    %370 = vmatprep.subr.bf16.mxu0 0
    %371 = vmatpush1.bf16.msra.mxu0 %v245
    %372 = vmatprep.subr.bf16.mxu0 0
    %373 = vmatpush1.bf16.msra.mxu0 %v246
    %374 = vmatprep.subr.bf16.mxu0 0
    %375 = vmatpush1.bf16.msra.mxu0 %v247
    %376 = vmatprep.subr.bf16.mxu0 0
    %377 = vmatpush1.bf16.msra.mxu0 %v248
    %378 = vmatprep.subr.bf16.mxu0 0
    %379 = vmatpush1.bf16.msra.mxu0 0
    %380 = vmatprep.subr.bf16.mxu0 0
    %381 = vmatpush1.bf16.msra.mxu0 0
    %382 = vmatprep.subr.bf16.mxu0 0
    %383 = vmatpush1.bf16.msra.mxu0 0
    %384 = vmatprep.subr.bf16.mxu0 0
    %385 = vmatpush1.bf16.msra.mxu0 0
    %386 = vmatprep.subr.bf16.mxu0 0
    %387 = vmatpush1.bf16.msra.mxu0 0
    %388 = vmatprep.subr.bf16.mxu0 0
    %389 = vmatpush1.bf16.msra.mxu0 0
    %390 = vmatprep.subr.bf16.mxu0 0
    %391 = vmatpush1.bf16.msra.mxu0 0
    %392 = vmatprep.subr.bf16.mxu0 0
    %393 = vmatpush1.bf16.msra.mxu0 0
    %394 = vmatprep.subr.bf16.mxu0 0
    %395 = vmatpush1.bf16.msra.mxu0 0
    %396 = vmatprep.subr.bf16.mxu0 0
    %397 = vmatpush1.bf16.msra.mxu0 0
    %398 = vmatprep.subr.bf16.mxu0 0
    %399 = vmatpush1.bf16.msra.mxu0 0
    %400 = vmatprep.subr.bf16.mxu0 0
    %401 = vmatpush1.bf16.msra.mxu0 0
    %402 = vmatprep.mubr.bf16.mxu0 0
    %403 = vmatmul.mubr.bf16.gmra.mrb[0].mxu0 %v359
    %v404 = vpop.f32.mrb[0].mxu0
    %v405 = vadd.f32 0.0, %v404
    %v406 = vpop.f32.mrb[0].mxu0
    %v407 = vpop.f32.mrb[0].mxu0
    %v408 = vadd.f32 0.0, %v407
    %v409 = vpop.f32.mrb[0].mxu0
    %410 = vmatprep.mubr.bf16.mxu0 0
    %411 = vmatmul.mubr.bf16.gmra.mrb[0].mxu0 %v362
    %v412 = vpop.f32.mrb[0].mxu0
    %v413 = vadd.f32 0.0, %v412
    %v414 = vpop.f32.mrb[0].mxu0
    %v415 = vpop.f32.mrb[0].mxu0
    %v416 = vadd.f32 0.0, %v415
    %v417 = vpop.f32.mrb[0].mxu0
    %418 = vmatprep.mubr.bf16.mxu0 0
    %419 = vmatmul.mubr.bf16.gmra.mrb[0].mxu0 %v365
    %v420 = vpop.f32.mrb[0].mxu0
    %v421 = vadd.f32 0.0, %v420
    %v422 = vpop.f32.mrb[0].mxu0
    %v423 = vpop.f32.mrb[0].mxu0
    %v424 = vadd.f32 0.0, %v423
    %v425 = vpop.f32.mrb[0].mxu0
    %426 = vmatprep.mubr.bf16.mxu0 0
    %427 = vmatmul.mubr.bf16.gmra.mrb[0].mxu0 %v368
    %v428 = vpop.f32.mrb[0].mxu0
    %v429 = vadd.f32 0.0, %v428
    %v430 = vpop.f32.mrb[0].mxu0
    %v431 = vpop.f32.mrb[0].mxu0
    %v432 = vadd.f32 0.0, %v431
    %v433 = vpop.f32.mrb[0].mxu0
    %434 = vdwg.mxu0
    %435 = vxpose.xlu0.b32.start [1/16] %v171, 128
    %436 = vxpose.xlu0.b32.cont [2/16] 0.0, 128
    %437 = vxpose.xlu0.b32.cont [3/16] 0.0, 128
    %438 = vxpose.xlu0.b32.cont [4/16] 0.0, 128
    %439 = vxpose.xlu0.b32.cont [5/16] 0.0, 128
    %440 = vxpose.xlu0.b32.cont [6/16] 0.0, 128
    %441 = vxpose.xlu0.b32.cont [7/16] 0.0, 128
    %442 = vxpose.xlu0.b32.cont [8/16] 0.0, 128
    %443 = vxpose.xlu0.b32.cont [9/16] 0.0, 128
    %444 = vxpose.xlu0.b32.cont [10/16] 0.0, 128
    %445 = vxpose.xlu0.b32.cont [11/16] 0.0, 128
    %446 = vxpose.xlu0.b32.cont [12/16] 0.0, 128
    %447 = vxpose.xlu0.b32.cont [13/16] 0.0, 128
    %448 = vxpose.xlu0.b32.cont [14/16] 0.0, 128
    %449 = vxpose.xlu0.b32.cont [15/16] 0.0, 128
    %450 = vxpose.xlu0.b32.end [16/16] 0.0, 128
    %v451 = vpop.trf.xlu0
    %v452 = vpop.trf.xlu0
    %v453 = vpop.trf.xlu0
    %v454 = vpop.trf.xlu0
    %v455 = vpop.trf.xlu0
    %v456 = vpop.trf.xlu0
    %v457 = vpop.trf.xlu0
    %v458 = vpop.trf.xlu0
    %v459 = vpop.trf.xlu0
    %v460 = vpop.trf.xlu0
    %v461 = vpop.trf.xlu0
    %v462 = vpop.trf.xlu0
    %v463 = vpop.trf.xlu0
    %v464 = vpop.trf.xlu0
    %v465 = vpop.trf.xlu0
    %v466 = vpop.trf.xlu0
    %467 = vxpose.xlu0.b32.start [1/16] %v174, 128
    %468 = vxpose.xlu0.b32.cont [2/16] 0.0, 128
    %469 = vxpose.xlu0.b32.cont [3/16] 0.0, 128
    %470 = vxpose.xlu0.b32.cont [4/16] 0.0, 128
    %471 = vxpose.xlu0.b32.cont [5/16] 0.0, 128
    %472 = vxpose.xlu0.b32.cont [6/16] 0.0, 128
    %473 = vxpose.xlu0.b32.cont [7/16] 0.0, 128
    %474 = vxpose.xlu0.b32.cont [8/16] 0.0, 128
    %475 = vxpose.xlu0.b32.cont [9/16] 0.0, 128
    %476 = vxpose.xlu0.b32.cont [10/16] 0.0, 128
    %477 = vxpose.xlu0.b32.cont [11/16] 0.0, 128
    %478 = vxpose.xlu0.b32.cont [12/16] 0.0, 128
    %479 = vxpose.xlu0.b32.cont [13/16] 0.0, 128
    %480 = vxpose.xlu0.b32.cont [14/16] 0.0, 128
    %481 = vxpose.xlu0.b32.cont [15/16] 0.0, 128
    %482 = vxpose.xlu0.b32.end [16/16] 0.0, 128
    %v483 = vpop.trf.xlu0
    %v484 = vpop.trf.xlu0
    %v485 = vpop.trf.xlu0
    %v486 = vpop.trf.xlu0
    %v487 = vpop.trf.xlu0
    %v488 = vpop.trf.xlu0
    %v489 = vpop.trf.xlu0
    %v490 = vpop.trf.xlu0
    %v491 = vpop.trf.xlu0
    %v492 = vpop.trf.xlu0
    %v493 = vpop.trf.xlu0
    %v494 = vpop.trf.xlu0
    %v495 = vpop.trf.xlu0
    %v496 = vpop.trf.xlu0
    %v497 = vpop.trf.xlu0
    %v498 = vpop.trf.xlu0
    %499 = vxpose.xlu0.b32.start [1/16] %v179, 128
    %500 = vxpose.xlu0.b32.cont [2/16] 0.0, 128
    %501 = vxpose.xlu0.b32.cont [3/16] 0.0, 128
    %502 = vxpose.xlu0.b32.cont [4/16] 0.0, 128
    %503 = vxpose.xlu0.b32.cont [5/16] 0.0, 128
    %504 = vxpose.xlu0.b32.cont [6/16] 0.0, 128
    %505 = vxpose.xlu0.b32.cont [7/16] 0.0, 128
    %506 = vxpose.xlu0.b32.cont [8/16] 0.0, 128
    %507 = vxpose.xlu0.b32.cont [9/16] 0.0, 128
    %508 = vxpose.xlu0.b32.cont [10/16] 0.0, 128
    %509 = vxpose.xlu0.b32.cont [11/16] 0.0, 128
    %510 = vxpose.xlu0.b32.cont [12/16] 0.0, 128
    %511 = vxpose.xlu0.b32.cont [13/16] 0.0, 128
    %512 = vxpose.xlu0.b32.cont [14/16] 0.0, 128
    %513 = vxpose.xlu0.b32.cont [15/16] 0.0, 128
    %514 = vxpose.xlu0.b32.end [16/16] 0.0, 128
    %v515 = vpop.trf.xlu0
    %v516 = vpop.trf.xlu0
    %v517 = vpop.trf.xlu0
    %v518 = vpop.trf.xlu0
    %v519 = vpop.trf.xlu0
    %v520 = vpop.trf.xlu0
    %v521 = vpop.trf.xlu0
    %v522 = vpop.trf.xlu0
    %v523 = vpop.trf.xlu0
    %v524 = vpop.trf.xlu0
    %v525 = vpop.trf.xlu0
    %v526 = vpop.trf.xlu0
    %v527 = vpop.trf.xlu0
    %v528 = vpop.trf.xlu0
    %v529 = vpop.trf.xlu0
    %v530 = vpop.trf.xlu0
    %531 = vxpose.xlu0.b32.start [1/16] %v182, 128
    %532 = vxpose.xlu0.b32.cont [2/16] 0.0, 128
    %533 = vxpose.xlu0.b32.cont [3/16] 0.0, 128
    %534 = vxpose.xlu0.b32.cont [4/16] 0.0, 128
    %535 = vxpose.xlu0.b32.cont [5/16] 0.0, 128
    %536 = vxpose.xlu0.b32.cont [6/16] 0.0, 128
    %537 = vxpose.xlu0.b32.cont [7/16] 0.0, 128
    %538 = vxpose.xlu0.b32.cont [8/16] 0.0, 128
    %539 = vxpose.xlu0.b32.cont [9/16] 0.0, 128
    %540 = vxpose.xlu0.b32.cont [10/16] 0.0, 128
    %541 = vxpose.xlu0.b32.cont [11/16] 0.0, 128
    %542 = vxpose.xlu0.b32.cont [12/16] 0.0, 128
    %543 = vxpose.xlu0.b32.cont [13/16] 0.0, 128
    %544 = vxpose.xlu0.b32.cont [14/16] 0.0, 128
    %545 = vxpose.xlu0.b32.cont [15/16] 0.0, 128
    %546 = vxpose.xlu0.b32.end [16/16] 0.0, 128
    %v547 = vpop.trf.xlu0
    %v548 = vpop.trf.xlu0
    %v549 = vpop.trf.xlu0
    %v550 = vpop.trf.xlu0
    %v551 = vpop.trf.xlu0
    %v552 = vpop.trf.xlu0
    %v553 = vpop.trf.xlu0
    %v554 = vpop.trf.xlu0
    %v555 = vpop.trf.xlu0
    %v556 = vpop.trf.xlu0
    %v557 = vpop.trf.xlu0
    %v558 = vpop.trf.xlu0
    %v559 = vpop.trf.xlu0
    %v560 = vpop.trf.xlu0
    %v561 = vpop.trf.xlu0
    %v562 = vpop.trf.xlu0
    %563 = vxpose.xlu0.b32.start [1/16] %v187, 128
    %564 = vxpose.xlu0.b32.cont [2/16] 0.0, 128
    %565 = vxpose.xlu0.b32.cont [3/16] 0.0, 128
    %566 = vxpose.xlu0.b32.cont [4/16] 0.0, 128
    %567 = vxpose.xlu0.b32.cont [5/16] 0.0, 128
    %568 = vxpose.xlu0.b32.cont [6/16] 0.0, 128
    %569 = vxpose.xlu0.b32.cont [7/16] 0.0, 128
    %570 = vxpose.xlu0.b32.cont [8/16] 0.0, 128
    %571 = vxpose.xlu0.b32.cont [9/16] 0.0, 128
    %572 = vxpose.xlu0.b32.cont [10/16] 0.0, 128
    %573 = vxpose.xlu0.b32.cont [11/16] 0.0, 128
    %574 = vxpose.xlu0.b32.cont [12/16] 0.0, 128
    %575 = vxpose.xlu0.b32.cont [13/16] 0.0, 128
    %576 = vxpose.xlu0.b32.cont [14/16] 0.0, 128
    %577 = vxpose.xlu0.b32.cont [15/16] 0.0, 128
    %578 = vxpose.xlu0.b32.end [16/16] 0.0, 128
    %v579 = vpop.trf.xlu0
    %v580 = vpop.trf.xlu0
    %v581 = vpop.trf.xlu0
    %v582 = vpop.trf.xlu0
    %v583 = vpop.trf.xlu0
    %v584 = vpop.trf.xlu0
    %v585 = vpop.trf.xlu0
    %v586 = vpop.trf.xlu0
    %v587 = vpop.trf.xlu0
    %v588 = vpop.trf.xlu0
    %v589 = vpop.trf.xlu0
    %v590 = vpop.trf.xlu0
    %v591 = vpop.trf.xlu0
    %v592 = vpop.trf.xlu0
    %v593 = vpop.trf.xlu0
    %v594 = vpop.trf.xlu0
    %595 = vxpose.xlu0.b32.start [1/16] %v190, 128
    %596 = vxpose.xlu0.b32.cont [2/16] 0.0, 128
    %597 = vxpose.xlu0.b32.cont [3/16] 0.0, 128
    %598 = vxpose.xlu0.b32.cont [4/16] 0.0, 128
    %599 = vxpose.xlu0.b32.cont [5/16] 0.0, 128
    %600 = vxpose.xlu0.b32.cont [6/16] 0.0, 128
    %601 = vxpose.xlu0.b32.cont [7/16] 0.0, 128
    %602 = vxpose.xlu0.b32.cont [8/16] 0.0, 128
    %603 = vxpose.xlu0.b32.cont [9/16] 0.0, 128
    %604 = vxpose.xlu0.b32.cont [10/16] 0.0, 128
    %605 = vxpose.xlu0.b32.cont [11/16] 0.0, 128
    %606 = vxpose.xlu0.b32.cont [12/16] 0.0, 128
    %607 = vxpose.xlu0.b32.cont [13/16] 0.0, 128
    %608 = vxpose.xlu0.b32.cont [14/16] 0.0, 128
    %609 = vxpose.xlu0.b32.cont [15/16] 0.0, 128
    %610 = vxpose.xlu0.b32.end [16/16] 0.0, 128
    %v611 = vpop.trf.xlu0
    %v612 = vpop.trf.xlu0
    %v613 = vpop.trf.xlu0
    %v614 = vpop.trf.xlu0
    %v615 = vpop.trf.xlu0
    %v616 = vpop.trf.xlu0
    %v617 = vpop.trf.xlu0
    %v618 = vpop.trf.xlu0
    %v619 = vpop.trf.xlu0
    %v620 = vpop.trf.xlu0
    %v621 = vpop.trf.xlu0
    %v622 = vpop.trf.xlu0
    %v623 = vpop.trf.xlu0
    %v624 = vpop.trf.xlu0
    %v625 = vpop.trf.xlu0
    %v626 = vpop.trf.xlu0
    %627 = vxpose.xlu0.b32.start [1/16] %v195, 128
    %628 = vxpose.xlu0.b32.cont [2/16] 0.0, 128
    %629 = vxpose.xlu0.b32.cont [3/16] 0.0, 128
    %630 = vxpose.xlu0.b32.cont [4/16] 0.0, 128
    %631 = vxpose.xlu0.b32.cont [5/16] 0.0, 128
    %632 = vxpose.xlu0.b32.cont [6/16] 0.0, 128
    %633 = vxpose.xlu0.b32.cont [7/16] 0.0, 128
    %634 = vxpose.xlu0.b32.cont [8/16] 0.0, 128
    %635 = vxpose.xlu0.b32.cont [9/16] 0.0, 128
    %636 = vxpose.xlu0.b32.cont [10/16] 0.0, 128
    %637 = vxpose.xlu0.b32.cont [11/16] 0.0, 128
    %638 = vxpose.xlu0.b32.cont [12/16] 0.0, 128
    %639 = vxpose.xlu0.b32.cont [13/16] 0.0, 128
    %640 = vxpose.xlu0.b32.cont [14/16] 0.0, 128
    %641 = vxpose.xlu0.b32.cont [15/16] 0.0, 128
    %642 = vxpose.xlu0.b32.end [16/16] 0.0, 128
    %v643 = vpop.trf.xlu0
    %v644 = vpop.trf.xlu0
    %v645 = vpop.trf.xlu0
    %v646 = vpop.trf.xlu0
    %v647 = vpop.trf.xlu0
    %v648 = vpop.trf.xlu0
    %v649 = vpop.trf.xlu0
    %v650 = vpop.trf.xlu0
    %v651 = vpop.trf.xlu0
    %v652 = vpop.trf.xlu0
    %v653 = vpop.trf.xlu0
    %v654 = vpop.trf.xlu0
    %v655 = vpop.trf.xlu0
    %v656 = vpop.trf.xlu0
    %v657 = vpop.trf.xlu0
    %v658 = vpop.trf.xlu0
    %659 = vxpose.xlu0.b32.start [1/16] %v198, 128
    %660 = vxpose.xlu0.b32.cont [2/16] 0.0, 128
    %661 = vxpose.xlu0.b32.cont [3/16] 0.0, 128
    %662 = vxpose.xlu0.b32.cont [4/16] 0.0, 128
    %663 = vxpose.xlu0.b32.cont [5/16] 0.0, 128
    %664 = vxpose.xlu0.b32.cont [6/16] 0.0, 128
    %665 = vxpose.xlu0.b32.cont [7/16] 0.0, 128
    %666 = vxpose.xlu0.b32.cont [8/16] 0.0, 128
    %667 = vxpose.xlu0.b32.cont [9/16] 0.0, 128
    %668 = vxpose.xlu0.b32.cont [10/16] 0.0, 128
    %669 = vxpose.xlu0.b32.cont [11/16] 0.0, 128
    %670 = vxpose.xlu0.b32.cont [12/16] 0.0, 128
    %671 = vxpose.xlu0.b32.cont [13/16] 0.0, 128
    %672 = vxpose.xlu0.b32.cont [14/16] 0.0, 128
    %673 = vxpose.xlu0.b32.cont [15/16] 0.0, 128
    %674 = vxpose.xlu0.b32.end [16/16] 0.0, 128
    %v675 = vpop.trf.xlu0
    %v676 = vpop.trf.xlu0
    %v677 = vpop.trf.xlu0
    %v678 = vpop.trf.xlu0
    %v679 = vpop.trf.xlu0
    %v680 = vpop.trf.xlu0
    %v681 = vpop.trf.xlu0
    %v682 = vpop.trf.xlu0
    %v683 = vpop.trf.xlu0
    %v684 = vpop.trf.xlu0
    %v685 = vpop.trf.xlu0
    %v686 = vpop.trf.xlu0
    %v687 = vpop.trf.xlu0
    %v688 = vpop.trf.xlu0
    %v689 = vpop.trf.xlu0
    %v690 = vpop.trf.xlu0
    %v691 = vpack.c.bf16 %v452, %v451
    %v692 = vpack.c.bf16 %v484, %v483
    %v693 = vpack.c.bf16 %v516, %v515
    %v694 = vpack.c.bf16 %v548, %v547
    %v695 = vpack.c.bf16 %v580, %v579
    %v696 = vpack.c.bf16 %v612, %v611
    %v697 = vpack.c.bf16 %v644, %v643
    %v698 = vpack.c.bf16 %v676, %v675
    %v699 = vpack.c.bf16 %v300, %v300
    %v700 = vpack.c.bf16 %v303, %v303
    %v701 = vpack.c.bf16 %v308, %v308
    %v702 = vpack.c.bf16 %v311, %v311
    %v703 = vpack.c.bf16 %v316, %v316
    %v704 = vpack.c.bf16 %v319, %v319
    %v705 = vpack.c.bf16 %v324, %v324
    %v706 = vpack.c.bf16 %v327, %v327
    %v707 = vpack.c.bf16 %v405, %v405
    %v708 = vpack.c.bf16 %v408, %v408
    %v709 = vpack.c.bf16 %v413, %v413
    %v710 = vpack.c.bf16 %v416, %v416
    %v711 = vpack.c.bf16 %v421, %v421
    %v712 = vpack.c.bf16 %v424, %v424
    %v713 = vpack.c.bf16 %v429, %v429
    %v714 = vpack.c.bf16 %v432, %v432
    %v715 = vld [vmem:[#allocation2] sm:$0xff]
    %v716 = vld [vmem:[#allocation2 + $0x8] sm:$0xff]
    %vm717 = vcmask 64512
    %v719 = vsel %vm717, %v691, 0
    %vm721 = vcmask 1043456
    %v723 = vsel %vm721, %v699, 0
    %725 = vmatprep.subr.bf16.mxu0 0
    %726 = vmatpush1.bf16.msra.mxu0 %v723
    %727 = vmatprep.subr.bf16.mxu0 0
    %728 = vmatpush1.bf16.msra.mxu0 0
    %729 = vmatprep.subr.bf16.mxu0 0
    %730 = vmatpush1.bf16.msra.mxu0 0
    %731 = vmatprep.subr.bf16.mxu0 0
    %732 = vmatpush1.bf16.msra.mxu0 0
    %733 = vmatprep.subr.bf16.mxu0 0
    %734 = vmatpush1.bf16.msra.mxu0 0
    %735 = vmatprep.subr.bf16.mxu0 0
    %736 = vmatpush1.bf16.msra.mxu0 0
    %737 = vmatprep.subr.bf16.mxu0 0
    %738 = vmatpush1.bf16.msra.mxu0 0
    %739 = vmatprep.subr.bf16.mxu0 0
    %740 = vmatpush1.bf16.msra.mxu0 0
    %741 = vmatprep.subr.bf16.mxu0 0
    %742 = vmatpush1.bf16.msra.mxu0 0
    %743 = vmatprep.subr.bf16.mxu0 0
    %744 = vmatpush1.bf16.msra.mxu0 0
    %745 = vmatprep.subr.bf16.mxu0 0
    %746 = vmatpush1.bf16.msra.mxu0 0
    %747 = vmatprep.subr.bf16.mxu0 0
    %748 = vmatpush1.bf16.msra.mxu0 0
    %749 = vmatprep.subr.bf16.mxu0 0
    %750 = vmatpush1.bf16.msra.mxu0 0
    %751 = vmatprep.subr.bf16.mxu0 0
    %752 = vmatpush1.bf16.msra.mxu0 0
    %753 = vmatprep.subr.bf16.mxu0 0
    %754 = vmatpush1.bf16.msra.mxu0 0
    %755 = vmatprep.subr.bf16.mxu0 0
    %756 = vmatpush1.bf16.msra.mxu0 0
    %757 = vmatprep.mubr.bf16.mxu0 0
    %758 = vmatmul.mubr.bf16.gmra.mrb[0].mxu0 %v719
    %v759 = vpop.f32.mrb[0].mxu0
    %v760 = vadd.f32 %v715, %v759
    %v761 = vpop.f32.mrb[0].mxu0
    %v762 = vpop.f32.mrb[0].mxu0
    %v763 = vadd.f32 %v716, %v762
    %v764 = vpop.f32.mrb[0].mxu0
    %765 = vdwg.mxu0
    %v767 = vsel %vm717, %v692, 0
    %v770 = vsel %vm721, %v700, 0
    %772 = vmatprep.subr.bf16.mxu0 0
    %773 = vmatpush1.bf16.msra.mxu0 %v770
    %774 = vmatprep.subr.bf16.mxu0 0
    %775 = vmatpush1.bf16.msra.mxu0 0
    %776 = vmatprep.subr.bf16.mxu0 0
    %777 = vmatpush1.bf16.msra.mxu0 0
    %778 = vmatprep.subr.bf16.mxu0 0
    %779 = vmatpush1.bf16.msra.mxu0 0
    %780 = vmatprep.subr.bf16.mxu0 0
    %781 = vmatpush1.bf16.msra.mxu0 0
    %782 = vmatprep.subr.bf16.mxu0 0
    %783 = vmatpush1.bf16.msra.mxu0 0
    %784 = vmatprep.subr.bf16.mxu0 0
    %785 = vmatpush1.bf16.msra.mxu0 0
    %786 = vmatprep.subr.bf16.mxu0 0
    %787 = vmatpush1.bf16.msra.mxu0 0
    %788 = vmatprep.subr.bf16.mxu0 0
    %789 = vmatpush1.bf16.msra.mxu0 0
    %790 = vmatprep.subr.bf16.mxu0 0
    %791 = vmatpush1.bf16.msra.mxu0 0
    %792 = vmatprep.subr.bf16.mxu0 0
    %793 = vmatpush1.bf16.msra.mxu0 0
    %794 = vmatprep.subr.bf16.mxu0 0
    %795 = vmatpush1.bf16.msra.mxu0 0
    %796 = vmatprep.subr.bf16.mxu0 0
    %797 = vmatpush1.bf16.msra.mxu0 0
    %798 = vmatprep.subr.bf16.mxu0 0
    %799 = vmatpush1.bf16.msra.mxu0 0
    %800 = vmatprep.subr.bf16.mxu0 0
    %801 = vmatpush1.bf16.msra.mxu0 0
    %802 = vmatprep.subr.bf16.mxu0 0
    %803 = vmatpush1.bf16.msra.mxu0 0
    %804 = vmatprep.mubr.bf16.mxu0 0
    %805 = vmatmul.mubr.bf16.gmra.mrb[0].mxu0 %v767
    %v806 = vpop.f32.mrb[0].mxu0
    %v807 = vadd.f32 %v715, %v806
    %v808 = vpop.f32.mrb[0].mxu0
    %v809 = vpop.f32.mrb[0].mxu0
    %v810 = vadd.f32 %v716, %v809
    %v811 = vpop.f32.mrb[0].mxu0
    %812 = vdwg.mxu0
    %v814 = vsel %vm717, %v693, 0
    %v817 = vsel %vm721, %v701, 0
    %819 = vmatprep.subr.bf16.mxu0 0
    %820 = vmatpush1.bf16.msra.mxu0 %v817
    %821 = vmatprep.subr.bf16.mxu0 0
    %822 = vmatpush1.bf16.msra.mxu0 0
    %823 = vmatprep.subr.bf16.mxu0 0
    %824 = vmatpush1.bf16.msra.mxu0 0
    %825 = vmatprep.subr.bf16.mxu0 0
    %826 = vmatpush1.bf16.msra.mxu0 0
    %827 = vmatprep.subr.bf16.mxu0 0
    %828 = vmatpush1.bf16.msra.mxu0 0
    %829 = vmatprep.subr.bf16.mxu0 0
    %830 = vmatpush1.bf16.msra.mxu0 0
    %831 = vmatprep.subr.bf16.mxu0 0
    %832 = vmatpush1.bf16.msra.mxu0 0
    %833 = vmatprep.subr.bf16.mxu0 0
    %834 = vmatpush1.bf16.msra.mxu0 0
    %835 = vmatprep.subr.bf16.mxu0 0
    %836 = vmatpush1.bf16.msra.mxu0 0
    %837 = vmatprep.subr.bf16.mxu0 0
    %838 = vmatpush1.bf16.msra.mxu0 0
    %839 = vmatprep.subr.bf16.mxu0 0
    %840 = vmatpush1.bf16.msra.mxu0 0
    %841 = vmatprep.subr.bf16.mxu0 0
    %842 = vmatpush1.bf16.msra.mxu0 0
    %843 = vmatprep.subr.bf16.mxu0 0
    %844 = vmatpush1.bf16.msra.mxu0 0
    %845 = vmatprep.subr.bf16.mxu0 0
    %846 = vmatpush1.bf16.msra.mxu0 0
    %847 = vmatprep.subr.bf16.mxu0 0
    %848 = vmatpush1.bf16.msra.mxu0 0
    %849 = vmatprep.subr.bf16.mxu0 0
    %850 = vmatpush1.bf16.msra.mxu0 0
    %851 = vmatprep.mubr.bf16.mxu0 0
    %852 = vmatmul.mubr.bf16.gmra.mrb[0].mxu0 %v814
    %v853 = vpop.f32.mrb[0].mxu0
    %v854 = vadd.f32 %v715, %v853
    %v855 = vpop.f32.mrb[0].mxu0
    %v856 = vpop.f32.mrb[0].mxu0
    %v857 = vadd.f32 %v716, %v856
    %v858 = vpop.f32.mrb[0].mxu0
    %859 = vdwg.mxu0
    %v861 = vsel %vm717, %v694, 0
    %v864 = vsel %vm721, %v702, 0
    %866 = vmatprep.subr.bf16.mxu0 0
    %867 = vmatpush1.bf16.msra.mxu0 %v864
    %868 = vmatprep.subr.bf16.mxu0 0
    %869 = vmatpush1.bf16.msra.mxu0 0
    %870 = vmatprep.subr.bf16.mxu0 0
    %871 = vmatpush1.bf16.msra.mxu0 0
    %872 = vmatprep.subr.bf16.mxu0 0
    %873 = vmatpush1.bf16.msra.mxu0 0
    %874 = vmatprep.subr.bf16.mxu0 0
    %875 = vmatpush1.bf16.msra.mxu0 0
    %876 = vmatprep.subr.bf16.mxu0 0
    %877 = vmatpush1.bf16.msra.mxu0 0
    %878 = vmatprep.subr.bf16.mxu0 0
    %879 = vmatpush1.bf16.msra.mxu0 0
    %880 = vmatprep.subr.bf16.mxu0 0
    %881 = vmatpush1.bf16.msra.mxu0 0
    %882 = vmatprep.subr.bf16.mxu0 0
    %883 = vmatpush1.bf16.msra.mxu0 0
    %884 = vmatprep.subr.bf16.mxu0 0
    %885 = vmatpush1.bf16.msra.mxu0 0
    %886 = vmatprep.subr.bf16.mxu0 0
    %887 = vmatpush1.bf16.msra.mxu0 0
    %888 = vmatprep.subr.bf16.mxu0 0
    %889 = vmatpush1.bf16.msra.mxu0 0
    %890 = vmatprep.subr.bf16.mxu0 0
    %891 = vmatpush1.bf16.msra.mxu0 0
    %892 = vmatprep.subr.bf16.mxu0 0
    %893 = vmatpush1.bf16.msra.mxu0 0
    %894 = vmatprep.subr.bf16.mxu0 0
    %895 = vmatpush1.bf16.msra.mxu0 0
    %896 = vmatprep.subr.bf16.mxu0 0
    %897 = vmatpush1.bf16.msra.mxu0 0
    %898 = vmatprep.mubr.bf16.mxu0 0
    %899 = vmatmul.mubr.bf16.gmra.mrb[0].mxu0 %v861
    %v900 = vpop.f32.mrb[0].mxu0
    %v901 = vadd.f32 %v715, %v900
    %v902 = vpop.f32.mrb[0].mxu0
    %v903 = vpop.f32.mrb[0].mxu0
    %v904 = vadd.f32 %v716, %v903
    %v905 = vpop.f32.mrb[0].mxu0
    %906 = vdwg.mxu0
    %v908 = vsel %vm717, %v695, 0
    %v911 = vsel %vm721, %v703, 0
    %913 = vmatprep.subr.bf16.mxu0 0
    %914 = vmatpush1.bf16.msra.mxu0 %v911
    %915 = vmatprep.subr.bf16.mxu0 0
    %916 = vmatpush1.bf16.msra.mxu0 0
    %917 = vmatprep.subr.bf16.mxu0 0
    %918 = vmatpush1.bf16.msra.mxu0 0
    %919 = vmatprep.subr.bf16.mxu0 0
    %920 = vmatpush1.bf16.msra.mxu0 0
    %921 = vmatprep.subr.bf16.mxu0 0
    %922 = vmatpush1.bf16.msra.mxu0 0
    %923 = vmatprep.subr.bf16.mxu0 0
    %924 = vmatpush1.bf16.msra.mxu0 0
    %925 = vmatprep.subr.bf16.mxu0 0
    %926 = vmatpush1.bf16.msra.mxu0 0
    %927 = vmatprep.subr.bf16.mxu0 0
    %928 = vmatpush1.bf16.msra.mxu0 0
    %929 = vmatprep.subr.bf16.mxu0 0
    %930 = vmatpush1.bf16.msra.mxu0 0
    %931 = vmatprep.subr.bf16.mxu0 0
    %932 = vmatpush1.bf16.msra.mxu0 0
    %933 = vmatprep.subr.bf16.mxu0 0
    %934 = vmatpush1.bf16.msra.mxu0 0
    %935 = vmatprep.subr.bf16.mxu0 0
    %936 = vmatpush1.bf16.msra.mxu0 0
    %937 = vmatprep.subr.bf16.mxu0 0
    %938 = vmatpush1.bf16.msra.mxu0 0
    %939 = vmatprep.subr.bf16.mxu0 0
    %940 = vmatpush1.bf16.msra.mxu0 0
    %941 = vmatprep.subr.bf16.mxu0 0
    %942 = vmatpush1.bf16.msra.mxu0 0
    %943 = vmatprep.subr.bf16.mxu0 0
    %944 = vmatpush1.bf16.msra.mxu0 0
    %945 = vmatprep.mubr.bf16.mxu0 0
    %946 = vmatmul.mubr.bf16.gmra.mrb[0].mxu0 %v908
    %v947 = vpop.f32.mrb[0].mxu0
    %v948 = vadd.f32 %v715, %v947
    %v949 = vpop.f32.mrb[0].mxu0
    %v950 = vpop.f32.mrb[0].mxu0
    %v951 = vadd.f32 %v716, %v950
    %v952 = vpop.f32.mrb[0].mxu0
    %953 = vdwg.mxu0
    %v955 = vsel %vm717, %v696, 0
    %v958 = vsel %vm721, %v704, 0
    %960 = vmatprep.subr.bf16.mxu0 0
    %961 = vmatpush1.bf16.msra.mxu0 %v958
    %962 = vmatprep.subr.bf16.mxu0 0
    %963 = vmatpush1.bf16.msra.mxu0 0
    %964 = vmatprep.subr.bf16.mxu0 0
    %965 = vmatpush1.bf16.msra.mxu0 0
    %966 = vmatprep.subr.bf16.mxu0 0
    %967 = vmatpush1.bf16.msra.mxu0 0
    %968 = vmatprep.subr.bf16.mxu0 0
    %969 = vmatpush1.bf16.msra.mxu0 0
    %970 = vmatprep.subr.bf16.mxu0 0
    %971 = vmatpush1.bf16.msra.mxu0 0
    %972 = vmatprep.subr.bf16.mxu0 0
    %973 = vmatpush1.bf16.msra.mxu0 0
    %974 = vmatprep.subr.bf16.mxu0 0
    %975 = vmatpush1.bf16.msra.mxu0 0
    %976 = vmatprep.subr.bf16.mxu0 0
    %977 = vmatpush1.bf16.msra.mxu0 0
    %978 = vmatprep.subr.bf16.mxu0 0
    %979 = vmatpush1.bf16.msra.mxu0 0
    %980 = vmatprep.subr.bf16.mxu0 0
    %981 = vmatpush1.bf16.msra.mxu0 0
    %982 = vmatprep.subr.bf16.mxu0 0
    %983 = vmatpush1.bf16.msra.mxu0 0
    %984 = vmatprep.subr.bf16.mxu0 0
    %985 = vmatpush1.bf16.msra.mxu0 0
    %986 = vmatprep.subr.bf16.mxu0 0
    %987 = vmatpush1.bf16.msra.mxu0 0
    %988 = vmatprep.subr.bf16.mxu0 0
    %989 = vmatpush1.bf16.msra.mxu0 0
    %990 = vmatprep.subr.bf16.mxu0 0
    %991 = vmatpush1.bf16.msra.mxu0 0
    %992 = vmatprep.mubr.bf16.mxu0 0
    %993 = vmatmul.mubr.bf16.gmra.mrb[0].mxu0 %v955
    %v994 = vpop.f32.mrb[0].mxu0
    %v995 = vadd.f32 %v715, %v994
    %v996 = vpop.f32.mrb[0].mxu0
    %v997 = vpop.f32.mrb[0].mxu0
    %v998 = vadd.f32 %v716, %v997
    %v999 = vpop.f32.mrb[0].mxu0
    %1000 = vdwg.mxu0
    %v1002 = vsel %vm717, %v697, 0
    %v1005 = vsel %vm721, %v705, 0
    %1007 = vmatprep.subr.bf16.mxu0 0
    %1008 = vmatpush1.bf16.msra.mxu0 %v1005
    %1009 = vmatprep.subr.bf16.mxu0 0
    %1010 = vmatpush1.bf16.msra.mxu0 0
    %1011 = vmatprep.subr.bf16.mxu0 0
    %1012 = vmatpush1.bf16.msra.mxu0 0
    %1013 = vmatprep.subr.bf16.mxu0 0
    %1014 = vmatpush1.bf16.msra.mxu0 0
    %1015 = vmatprep.subr.bf16.mxu0 0
    %1016 = vmatpush1.bf16.msra.mxu0 0
    %1017 = vmatprep.subr.bf16.mxu0 0
    %1018 = vmatpush1.bf16.msra.mxu0 0
    %1019 = vmatprep.subr.bf16.mxu0 0
    %1020 = vmatpush1.bf16.msra.mxu0 0
    %1021 = vmatprep.subr.bf16.mxu0 0
    %1022 = vmatpush1.bf16.msra.mxu0 0
    %1023 = vmatprep.subr.bf16.mxu0 0
    %1024 = vmatpush1.bf16.msra.mxu0 0
    %1025 = vmatprep.subr.bf16.mxu0 0
    %1026 = vmatpush1.bf16.msra.mxu0 0
    %1027 = vmatprep.subr.bf16.mxu0 0
    %1028 = vmatpush1.bf16.msra.mxu0 0
    %1029 = vmatprep.subr.bf16.mxu0 0
    %1030 = vmatpush1.bf16.msra.mxu0 0
    %1031 = vmatprep.subr.bf16.mxu0 0
    %1032 = vmatpush1.bf16.msra.mxu0 0
    %1033 = vmatprep.subr.bf16.mxu0 0
    %1034 = vmatpush1.bf16.msra.mxu0 0
    %1035 = vmatprep.subr.bf16.mxu0 0
    %1036 = vmatpush1.bf16.msra.mxu0 0
    %1037 = vmatprep.subr.bf16.mxu0 0
    %1038 = vmatpush1.bf16.msra.mxu0 0
    %1039 = vmatprep.mubr.bf16.mxu0 0
    %1040 = vmatmul.mubr.bf16.gmra.mrb[0].mxu0 %v1002
    %v1041 = vpop.f32.mrb[0].mxu0
    %v1042 = vadd.f32 %v715, %v1041
    %v1043 = vpop.f32.mrb[0].mxu0
    %v1044 = vpop.f32.mrb[0].mxu0
    %v1045 = vadd.f32 %v716, %v1044
    %v1046 = vpop.f32.mrb[0].mxu0
    %1047 = vdwg.mxu0
    %v1049 = vsel %vm717, %v698, 0
    %v1052 = vsel %vm721, %v706, 0
    %1054 = vmatprep.subr.bf16.mxu0 0
    %1055 = vmatpush1.bf16.msra.mxu0 %v1052
    %1056 = vmatprep.subr.bf16.mxu0 0
    %1057 = vmatpush1.bf16.msra.mxu0 0
    %1058 = vmatprep.subr.bf16.mxu0 0
    %1059 = vmatpush1.bf16.msra.mxu0 0
    %1060 = vmatprep.subr.bf16.mxu0 0
    %1061 = vmatpush1.bf16.msra.mxu0 0
    %1062 = vmatprep.subr.bf16.mxu0 0
    %1063 = vmatpush1.bf16.msra.mxu0 0
    %1064 = vmatprep.subr.bf16.mxu0 0
    %1065 = vmatpush1.bf16.msra.mxu0 0
    %1066 = vmatprep.subr.bf16.mxu0 0
    %1067 = vmatpush1.bf16.msra.mxu0 0
    %1068 = vmatprep.subr.bf16.mxu0 0
    %1069 = vmatpush1.bf16.msra.mxu0 0
    %1070 = vmatprep.subr.bf16.mxu0 0
    %1071 = vmatpush1.bf16.msra.mxu0 0
    %1072 = vmatprep.subr.bf16.mxu0 0
    %1073 = vmatpush1.bf16.msra.mxu0 0
    %1074 = vmatprep.subr.bf16.mxu0 0
    %1075 = vmatpush1.bf16.msra.mxu0 0
    %1076 = vmatprep.subr.bf16.mxu0 0
    %1077 = vmatpush1.bf16.msra.mxu0 0
    %1078 = vmatprep.subr.bf16.mxu0 0
    %1079 = vmatpush1.bf16.msra.mxu0 0
    %1080 = vmatprep.subr.bf16.mxu0 0
    %1081 = vmatpush1.bf16.msra.mxu0 0
    %1082 = vmatprep.subr.bf16.mxu0 0
    %1083 = vmatpush1.bf16.msra.mxu0 0
    %1084 = vmatprep.subr.bf16.mxu0 0
    %1085 = vmatpush1.bf16.msra.mxu0 0
    %1086 = vmatprep.mubr.bf16.mxu0 0
    %1087 = vmatmul.mubr.bf16.gmra.mrb[0].mxu0 %v1049
    %v1088 = vpop.f32.mrb[0].mxu0
    %v1089 = vadd.f32 %v715, %v1088
    %v1090 = vpop.f32.mrb[0].mxu0
    %v1091 = vpop.f32.mrb[0].mxu0
    %v1092 = vadd.f32 %v716, %v1091
    %v1093 = vpop.f32.mrb[0].mxu0
    %1094 = vdwg.mxu0
    %vm1095 = vcmask 130048
    %v1096 = vsel %vm1095, %v760, -inf
    %1097 = vmax.xlane.f32.xlu0 %v1096
    %v1098 = vpop.xlane.xlu0 %1097
    %v1099 = vsel %vm1095, %v763, -inf
    %1100 = vmax.xlane.f32.xlu0 %v1099
    %v1101 = vpop.xlane.xlu0 %1100
    %v1102 = vsel %vm1095, %v807, -inf
    %1103 = vmax.xlane.f32.xlu0 %v1102
    %v1104 = vpop.xlane.xlu0 %1103
    %v1105 = vsel %vm1095, %v810, -inf
    %1106 = vmax.xlane.f32.xlu0 %v1105
    %v1107 = vpop.xlane.xlu0 %1106
    %v1108 = vsel %vm1095, %v854, -inf
    %1109 = vmax.xlane.f32.xlu0 %v1108
    %v1110 = vpop.xlane.xlu0 %1109
    %v1111 = vsel %vm1095, %v857, -inf
    %1112 = vmax.xlane.f32.xlu0 %v1111
    %v1113 = vpop.xlane.xlu0 %1112
    %v1114 = vsel %vm1095, %v901, -inf
    %1115 = vmax.xlane.f32.xlu0 %v1114
    %v1116 = vpop.xlane.xlu0 %1115
    %v1117 = vsel %vm1095, %v904, -inf
    %1118 = vmax.xlane.f32.xlu0 %v1117
    %v1119 = vpop.xlane.xlu0 %1118
    %v1120 = vsel %vm1095, %v948, -inf
    %1121 = vmax.xlane.f32.xlu0 %v1120
    %v1122 = vpop.xlane.xlu0 %1121
    %v1123 = vsel %vm1095, %v951, -inf
    %1124 = vmax.xlane.f32.xlu0 %v1123
    %v1125 = vpop.xlane.xlu0 %1124
    %v1126 = vsel %vm1095, %v995, -inf
    %1127 = vmax.xlane.f32.xlu0 %v1126
    %v1128 = vpop.xlane.xlu0 %1127
    %v1129 = vsel %vm1095, %v998, -inf
    %1130 = vmax.xlane.f32.xlu0 %v1129
    %v1131 = vpop.xlane.xlu0 %1130
    %v1132 = vsel %vm1095, %v1042, -inf
    %1133 = vmax.xlane.f32.xlu0 %v1132
    %v1134 = vpop.xlane.xlu0 %1133
    %v1135 = vsel %vm1095, %v1045, -inf
    %1136 = vmax.xlane.f32.xlu0 %v1135
    %v1137 = vpop.xlane.xlu0 %1136
    %v1138 = vsel %vm1095, %v1089, -inf
    %1139 = vmax.xlane.f32.xlu0 %v1138
    %v1140 = vpop.xlane.xlu0 %1139
    %v1141 = vsel %vm1095, %v1092, -inf
    %1142 = vmax.xlane.f32.xlu0 %v1141
    %v1143 = vpop.xlane.xlu0 %1142
    %v1144 = vsub.f32 %v760, %v1098
    %v1145 = vsub.f32 %v763, %v1101
    %v1146 = vsub.f32 %v807, %v1104
    %v1147 = vsub.f32 %v810, %v1107
    %v1148 = vsub.f32 %v854, %v1110
    %v1149 = vsub.f32 %v857, %v1113
    %v1150 = vsub.f32 %v901, %v1116
    %v1151 = vsub.f32 %v904, %v1119
    %v1152 = vsub.f32 %v948, %v1122
    %v1153 = vsub.f32 %v951, %v1125
    %v1154 = vsub.f32 %v995, %v1128
    %v1155 = vsub.f32 %v998, %v1131
    %v1156 = vsub.f32 %v1042, %v1134
    %v1157 = vsub.f32 %v1045, %v1137
    %v1158 = vsub.f32 %v1089, %v1140
    %v1159 = vsub.f32 %v1092, %v1143
    %v1160 = vmul.f32 %v1144, 1.442695
    %v1161 = vpow.pop %v1160
    %v1162 = vmul.f32 %v1145, 1.442695
    %v1163 = vpow.pop %v1162
    %v1164 = vmul.f32 %v1146, 1.442695
    %v1165 = vpow.pop %v1164
    %v1166 = vmul.f32 %v1147, 1.442695
    %v1167 = vpow.pop %v1166
    %v1168 = vmul.f32 %v1148, 1.442695
    %v1169 = vpow.pop %v1168
    %v1170 = vmul.f32 %v1149, 1.442695
    %v1171 = vpow.pop %v1170
    %v1172 = vmul.f32 %v1150, 1.442695
    %v1173 = vpow.pop %v1172
    %v1174 = vmul.f32 %v1151, 1.442695
    %v1175 = vpow.pop %v1174
    %v1176 = vmul.f32 %v1152, 1.442695
    %v1177 = vpow.pop %v1176
    %v1178 = vmul.f32 %v1153, 1.442695
    %v1179 = vpow.pop %v1178
    %v1180 = vmul.f32 %v1154, 1.442695
    %v1181 = vpow.pop %v1180
    %v1182 = vmul.f32 %v1155, 1.442695
    %v1183 = vpow.pop %v1182
    %v1184 = vmul.f32 %v1156, 1.442695
    %v1185 = vpow.pop %v1184
    %v1186 = vmul.f32 %v1157, 1.442695
    %v1187 = vpow.pop %v1186
    %v1188 = vmul.f32 %v1158, 1.442695
    %v1189 = vpow.pop %v1188
    %v1190 = vmul.f32 %v1159, 1.442695
    %v1191 = vpow.pop %v1190
    %v1192 = vsel %vm1095, %v1161, 0.0
    %1193 = vadd.xlane.f32.xlu0 %v1192
    %v1194 = vpop.xlane.xlu0 %1193
    %v1195 = vsel %vm1095, %v1163, 0.0
    %1196 = vadd.xlane.f32.xlu0 %v1195
    %v1197 = vpop.xlane.xlu0 %1196
    %v1198 = vsel %vm1095, %v1165, 0.0
    %1199 = vadd.xlane.f32.xlu0 %v1198
    %v1200 = vpop.xlane.xlu0 %1199
    %v1201 = vsel %vm1095, %v1167, 0.0
    %1202 = vadd.xlane.f32.xlu0 %v1201
    %v1203 = vpop.xlane.xlu0 %1202
    %v1204 = vsel %vm1095, %v1169, 0.0
    %1205 = vadd.xlane.f32.xlu0 %v1204
    %v1206 = vpop.xlane.xlu0 %1205
    %v1207 = vsel %vm1095, %v1171, 0.0
    %1208 = vadd.xlane.f32.xlu0 %v1207
    %v1209 = vpop.xlane.xlu0 %1208
    %v1210 = vsel %vm1095, %v1173, 0.0
    %1211 = vadd.xlane.f32.xlu0 %v1210
    %v1212 = vpop.xlane.xlu0 %1211
    %v1213 = vsel %vm1095, %v1175, 0.0
    %1214 = vadd.xlane.f32.xlu0 %v1213
    %v1215 = vpop.xlane.xlu0 %1214
    %v1216 = vsel %vm1095, %v1177, 0.0
    %1217 = vadd.xlane.f32.xlu0 %v1216
    %v1218 = vpop.xlane.xlu0 %1217
    %v1219 = vsel %vm1095, %v1179, 0.0
    %1220 = vadd.xlane.f32.xlu0 %v1219
    %v1221 = vpop.xlane.xlu0 %1220
    %v1222 = vsel %vm1095, %v1181, 0.0
    %1223 = vadd.xlane.f32.xlu0 %v1222
    %v1224 = vpop.xlane.xlu0 %1223
    %v1225 = vsel %vm1095, %v1183, 0.0
    %1226 = vadd.xlane.f32.xlu0 %v1225
    %v1227 = vpop.xlane.xlu0 %1226
    %v1228 = vsel %vm1095, %v1185, 0.0
    %1229 = vadd.xlane.f32.xlu0 %v1228
    %v1230 = vpop.xlane.xlu0 %1229
    %v1231 = vsel %vm1095, %v1187, 0.0
    %1232 = vadd.xlane.f32.xlu0 %v1231
    %v1233 = vpop.xlane.xlu0 %1232
    %v1234 = vsel %vm1095, %v1189, 0.0
    %1235 = vadd.xlane.f32.xlu0 %v1234
    %v1236 = vpop.xlane.xlu0 %1235
    %v1237 = vsel %vm1095, %v1191, 0.0
    %1238 = vadd.xlane.f32.xlu0 %v1237
    %v1239 = vpop.xlane.xlu0 %1238
    %v1240 = vrcp.pop %v1194
    %v1241 = vrcp.pop %v1197
    %v1242 = vrcp.pop %v1200
    %v1243 = vrcp.pop %v1203
    %v1244 = vrcp.pop %v1206
    %v1245 = vrcp.pop %v1209
    %v1246 = vrcp.pop %v1212
    %v1247 = vrcp.pop %v1215
    %v1248 = vrcp.pop %v1218
    %v1249 = vrcp.pop %v1221
    %v1250 = vrcp.pop %v1224
    %v1251 = vrcp.pop %v1227
    %v1252 = vrcp.pop %v1230
    %v1253 = vrcp.pop %v1233
    %v1254 = vrcp.pop %v1236
    %v1255 = vrcp.pop %v1239
    %v1256 = vmul.f32 %v1161, %v1240
    %v1257 = vmul.f32 %v1163, %v1241
    %v1258 = vmul.f32 %v1165, %v1242
    %v1259 = vmul.f32 %v1167, %v1243
    %v1260 = vmul.f32 %v1169, %v1244
    %v1261 = vmul.f32 %v1171, %v1245
    %v1262 = vmul.f32 %v1173, %v1246
    %v1263 = vmul.f32 %v1175, %v1247
    %v1264 = vmul.f32 %v1177, %v1248
    %v1265 = vmul.f32 %v1179, %v1249
    %v1266 = vmul.f32 %v1181, %v1250
    %v1267 = vmul.f32 %v1183, %v1251
    %v1268 = vmul.f32 %v1185, %v1252
    %v1269 = vmul.f32 %v1187, %v1253
    %v1270 = vmul.f32 %v1189, %v1254
    %v1271 = vmul.f32 %v1191, %v1255
    %v1272 = vpack.c.bf16 %v1257, %v1256
    %v1273 = vpack.c.bf16 %v1259, %v1258
    %v1274 = vpack.c.bf16 %v1261, %v1260
    %v1275 = vpack.c.bf16 %v1263, %v1262
    %v1276 = vpack.c.bf16 %v1265, %v1264
    %v1277 = vpack.c.bf16 %v1267, %v1266
    %v1278 = vpack.c.bf16 %v1269, %v1268
    %v1279 = vpack.c.bf16 %v1271, %v1270
    %v1281 = vsel %vm1095, %v707, 0
    %v1284 = vsel %vm1095, %v1272, 0
    %1286 = vmatprep.subr.bf16.mxu0 0
    %1287 = vmatpush1.bf16.xpose.msra.mxu0 %v1284
    %1288 = vmatprep.subr.bf16.mxu0 0
    %1289 = vmatpush1.bf16.xpose.msra.mxu0 0
    %1290 = vmatprep.subr.bf16.mxu0 0
    %1291 = vmatpush1.bf16.xpose.msra.mxu0 0
    %1292 = vmatprep.subr.bf16.mxu0 0
    %1293 = vmatpush1.bf16.xpose.msra.mxu0 0
    %1294 = vmatprep.subr.bf16.mxu0 0
    %1295 = vmatpush1.bf16.xpose.msra.mxu0 0
    %1296 = vmatprep.subr.bf16.mxu0 0
    %1297 = vmatpush1.bf16.xpose.msra.mxu0 0
    %1298 = vmatprep.subr.bf16.mxu0 0
    %1299 = vmatpush1.bf16.xpose.msra.mxu0 0
    %1300 = vmatprep.subr.bf16.mxu0 0
    %1301 = vmatpush1.bf16.xpose.msra.mxu0 0
    %1302 = vmatprep.subr.bf16.mxu0 0
    %1303 = vmatpush1.bf16.xpose.msra.mxu0 0
    %1304 = vmatprep.subr.bf16.mxu0 0
    %1305 = vmatpush1.bf16.xpose.msra.mxu0 0
    %1306 = vmatprep.subr.bf16.mxu0 0
    %1307 = vmatpush1.bf16.xpose.msra.mxu0 0
    %1308 = vmatprep.subr.bf16.mxu0 0
    %1309 = vmatpush1.bf16.xpose.msra.mxu0 0
    %1310 = vmatprep.subr.bf16.mxu0 0
    %1311 = vmatpush1.bf16.xpose.msra.mxu0 0
    %1312 = vmatprep.subr.bf16.mxu0 0
    %1313 = vmatpush1.bf16.xpose.msra.mxu0 0
    %1314 = vmatprep.subr.bf16.mxu0 0
    %1315 = vmatpush1.bf16.xpose.msra.mxu0 0
    %1316 = vmatprep.subr.bf16.mxu0 0
    %1317 = vmatpush1.bf16.xpose.msra.mxu0 0
    %1318 = vmatprep.mubr.bf16.mxu0 0
    %1319 = vmatmul.mubr.bf16.gmra.mrb[0].mxu0 %v1281
    %v1320 = vpop.f32.mrb[0].mxu0
    %v1321 = vadd.f32 0.0, %v1320
    %v1322 = vpop.f32.mrb[0].mxu0
    %v1323 = vpop.f32.mrb[0].mxu0
    %v1324 = vpop.f32.mrb[0].mxu0
    %1325 = vdwg.mxu0
    %v1327 = vsel %vm1095, %v708, 0
    %v1330 = vsel %vm1095, %v1273, 0
    %1332 = vmatprep.subr.bf16.mxu0 0
    %1333 = vmatpush1.bf16.xpose.msra.mxu0 %v1330
    %1334 = vmatprep.subr.bf16.mxu0 0
    %1335 = vmatpush1.bf16.xpose.msra.mxu0 0
    %1336 = vmatprep.subr.bf16.mxu0 0
    %1337 = vmatpush1.bf16.xpose.msra.mxu0 0
    %1338 = vmatprep.subr.bf16.mxu0 0
    %1339 = vmatpush1.bf16.xpose.msra.mxu0 0
    %1340 = vmatprep.subr.bf16.mxu0 0
    %1341 = vmatpush1.bf16.xpose.msra.mxu0 0
    %1342 = vmatprep.subr.bf16.mxu0 0
    %1343 = vmatpush1.bf16.xpose.msra.mxu0 0
    %1344 = vmatprep.subr.bf16.mxu0 0
    %1345 = vmatpush1.bf16.xpose.msra.mxu0 0
    %1346 = vmatprep.subr.bf16.mxu0 0
    %1347 = vmatpush1.bf16.xpose.msra.mxu0 0
    %1348 = vmatprep.subr.bf16.mxu0 0
    %1349 = vmatpush1.bf16.xpose.msra.mxu0 0
    %1350 = vmatprep.subr.bf16.mxu0 0
    %1351 = vmatpush1.bf16.xpose.msra.mxu0 0
    %1352 = vmatprep.subr.bf16.mxu0 0
    %1353 = vmatpush1.bf16.xpose.msra.mxu0 0
    %1354 = vmatprep.subr.bf16.mxu0 0
    %1355 = vmatpush1.bf16.xpose.msra.mxu0 0
    %1356 = vmatprep.subr.bf16.mxu0 0
    %1357 = vmatpush1.bf16.xpose.msra.mxu0 0
    %1358 = vmatprep.subr.bf16.mxu0 0
    %1359 = vmatpush1.bf16.xpose.msra.mxu0 0
    %1360 = vmatprep.subr.bf16.mxu0 0
    %1361 = vmatpush1.bf16.xpose.msra.mxu0 0
    %1362 = vmatprep.subr.bf16.mxu0 0
    %1363 = vmatpush1.bf16.xpose.msra.mxu0 0
    %1364 = vmatprep.mubr.bf16.mxu0 0
    %1365 = vmatmul.mubr.bf16.gmra.mrb[0].mxu0 %v1327
    %v1366 = vpop.f32.mrb[0].mxu0
    %v1367 = vadd.f32 0.0, %v1366
    %v1368 = vpop.f32.mrb[0].mxu0
    %v1369 = vpop.f32.mrb[0].mxu0
    %v1370 = vpop.f32.mrb[0].mxu0
    %1371 = vdwg.mxu0
    %v1373 = vsel %vm1095, %v709, 0
    %v1376 = vsel %vm1095, %v1274, 0
    %1378 = vmatprep.subr.bf16.mxu0 0
    %1379 = vmatpush1.bf16.xpose.msra.mxu0 %v1376
    %1380 = vmatprep.subr.bf16.mxu0 0
    %1381 = vmatpush1.bf16.xpose.msra.mxu0 0
    %1382 = vmatprep.subr.bf16.mxu0 0
    %1383 = vmatpush1.bf16.xpose.msra.mxu0 0
    %1384 = vmatprep.subr.bf16.mxu0 0
    %1385 = vmatpush1.bf16.xpose.msra.mxu0 0
    %1386 = vmatprep.subr.bf16.mxu0 0
    %1387 = vmatpush1.bf16.xpose.msra.mxu0 0
    %1388 = vmatprep.subr.bf16.mxu0 0
    %1389 = vmatpush1.bf16.xpose.msra.mxu0 0
    %1390 = vmatprep.subr.bf16.mxu0 0
    %1391 = vmatpush1.bf16.xpose.msra.mxu0 0
    %1392 = vmatprep.subr.bf16.mxu0 0
    %1393 = vmatpush1.bf16.xpose.msra.mxu0 0
    %1394 = vmatprep.subr.bf16.mxu0 0
    %1395 = vmatpush1.bf16.xpose.msra.mxu0 0
    %1396 = vmatprep.subr.bf16.mxu0 0
    %1397 = vmatpush1.bf16.xpose.msra.mxu0 0
    %1398 = vmatprep.subr.bf16.mxu0 0
    %1399 = vmatpush1.bf16.xpose.msra.mxu0 0
    %1400 = vmatprep.subr.bf16.mxu0 0
    %1401 = vmatpush1.bf16.xpose.msra.mxu0 0
    %1402 = vmatprep.subr.bf16.mxu0 0
    %1403 = vmatpush1.bf16.xpose.msra.mxu0 0
    %1404 = vmatprep.subr.bf16.mxu0 0
    %1405 = vmatpush1.bf16.xpose.msra.mxu0 0
    %1406 = vmatprep.subr.bf16.mxu0 0
    %1407 = vmatpush1.bf16.xpose.msra.mxu0 0
    %1408 = vmatprep.subr.bf16.mxu0 0
    %1409 = vmatpush1.bf16.xpose.msra.mxu0 0
    %1410 = vmatprep.mubr.bf16.mxu0 0
    %1411 = vmatmul.mubr.bf16.gmra.mrb[0].mxu0 %v1373
    %v1412 = vpop.f32.mrb[0].mxu0
    %v1413 = vadd.f32 0.0, %v1412
    %v1414 = vpop.f32.mrb[0].mxu0
    %v1415 = vpop.f32.mrb[0].mxu0
    %v1416 = vpop.f32.mrb[0].mxu0
    %1417 = vdwg.mxu0
    %v1419 = vsel %vm1095, %v710, 0
    %v1422 = vsel %vm1095, %v1275, 0
    %1424 = vmatprep.subr.bf16.mxu0 0
    %1425 = vmatpush1.bf16.xpose.msra.mxu0 %v1422
    %1426 = vmatprep.subr.bf16.mxu0 0
    %1427 = vmatpush1.bf16.xpose.msra.mxu0 0
    %1428 = vmatprep.subr.bf16.mxu0 0
    %1429 = vmatpush1.bf16.xpose.msra.mxu0 0
    %1430 = vmatprep.subr.bf16.mxu0 0
    %1431 = vmatpush1.bf16.xpose.msra.mxu0 0
    %1432 = vmatprep.subr.bf16.mxu0 0
    %1433 = vmatpush1.bf16.xpose.msra.mxu0 0
    %1434 = vmatprep.subr.bf16.mxu0 0
    %1435 = vmatpush1.bf16.xpose.msra.mxu0 0
    %1436 = vmatprep.subr.bf16.mxu0 0
    %1437 = vmatpush1.bf16.xpose.msra.mxu0 0
    %1438 = vmatprep.subr.bf16.mxu0 0
    %1439 = vmatpush1.bf16.xpose.msra.mxu0 0
    %1440 = vmatprep.subr.bf16.mxu0 0
    %1441 = vmatpush1.bf16.xpose.msra.mxu0 0
    %1442 = vmatprep.subr.bf16.mxu0 0
    %1443 = vmatpush1.bf16.xpose.msra.mxu0 0
    %1444 = vmatprep.subr.bf16.mxu0 0
    %1445 = vmatpush1.bf16.xpose.msra.mxu0 0
    %1446 = vmatprep.subr.bf16.mxu0 0
    %1447 = vmatpush1.bf16.xpose.msra.mxu0 0
    %1448 = vmatprep.subr.bf16.mxu0 0
    %1449 = vmatpush1.bf16.xpose.msra.mxu0 0
    %1450 = vmatprep.subr.bf16.mxu0 0
    %1451 = vmatpush1.bf16.xpose.msra.mxu0 0
    %1452 = vmatprep.subr.bf16.mxu0 0
    %1453 = vmatpush1.bf16.xpose.msra.mxu0 0
    %1454 = vmatprep.subr.bf16.mxu0 0
    %1455 = vmatpush1.bf16.xpose.msra.mxu0 0
    %1456 = vmatprep.mubr.bf16.mxu0 0
    %1457 = vmatmul.mubr.bf16.gmra.mrb[0].mxu0 %v1419
    %v1458 = vpop.f32.mrb[0].mxu0
    %v1459 = vadd.f32 0.0, %v1458
    %v1460 = vpop.f32.mrb[0].mxu0
    %v1461 = vpop.f32.mrb[0].mxu0
    %v1462 = vpop.f32.mrb[0].mxu0
    %1463 = vdwg.mxu0
    %v1465 = vsel %vm1095, %v711, 0
    %v1468 = vsel %vm1095, %v1276, 0
    %1470 = vmatprep.subr.bf16.mxu0 0
    %1471 = vmatpush1.bf16.xpose.msra.mxu0 %v1468
    %1472 = vmatprep.subr.bf16.mxu0 0
    %1473 = vmatpush1.bf16.xpose.msra.mxu0 0
    %1474 = vmatprep.subr.bf16.mxu0 0
    %1475 = vmatpush1.bf16.xpose.msra.mxu0 0
    %1476 = vmatprep.subr.bf16.mxu0 0
    %1477 = vmatpush1.bf16.xpose.msra.mxu0 0
    %1478 = vmatprep.subr.bf16.mxu0 0
    %1479 = vmatpush1.bf16.xpose.msra.mxu0 0
    %1480 = vmatprep.subr.bf16.mxu0 0
    %1481 = vmatpush1.bf16.xpose.msra.mxu0 0
    %1482 = vmatprep.subr.bf16.mxu0 0
    %1483 = vmatpush1.bf16.xpose.msra.mxu0 0
    %1484 = vmatprep.subr.bf16.mxu0 0
    %1485 = vmatpush1.bf16.xpose.msra.mxu0 0
    %1486 = vmatprep.subr.bf16.mxu0 0
    %1487 = vmatpush1.bf16.xpose.msra.mxu0 0
    %1488 = vmatprep.subr.bf16.mxu0 0
    %1489 = vmatpush1.bf16.xpose.msra.mxu0 0
    %1490 = vmatprep.subr.bf16.mxu0 0
    %1491 = vmatpush1.bf16.xpose.msra.mxu0 0
    %1492 = vmatprep.subr.bf16.mxu0 0
    %1493 = vmatpush1.bf16.xpose.msra.mxu0 0
    %1494 = vmatprep.subr.bf16.mxu0 0
    %1495 = vmatpush1.bf16.xpose.msra.mxu0 0
    %1496 = vmatprep.subr.bf16.mxu0 0
    %1497 = vmatpush1.bf16.xpose.msra.mxu0 0
    %1498 = vmatprep.subr.bf16.mxu0 0
    %1499 = vmatpush1.bf16.xpose.msra.mxu0 0
    %1500 = vmatprep.subr.bf16.mxu0 0
    %1501 = vmatpush1.bf16.xpose.msra.mxu0 0
    %1502 = vmatprep.mubr.bf16.mxu0 0
    %1503 = vmatmul.mubr.bf16.gmra.mrb[0].mxu0 %v1465
    %v1504 = vpop.f32.mrb[0].mxu0
    %v1505 = vadd.f32 0.0, %v1504
    %v1506 = vpop.f32.mrb[0].mxu0
    %v1507 = vpop.f32.mrb[0].mxu0
    %v1508 = vpop.f32.mrb[0].mxu0
    %1509 = vdwg.mxu0
    %v1511 = vsel %vm1095, %v712, 0
    %v1514 = vsel %vm1095, %v1277, 0
    %1516 = vmatprep.subr.bf16.mxu0 0
    %1517 = vmatpush1.bf16.xpose.msra.mxu0 %v1514
    %1518 = vmatprep.subr.bf16.mxu0 0
    %1519 = vmatpush1.bf16.xpose.msra.mxu0 0
    %1520 = vmatprep.subr.bf16.mxu0 0
    %1521 = vmatpush1.bf16.xpose.msra.mxu0 0
    %1522 = vmatprep.subr.bf16.mxu0 0
    %1523 = vmatpush1.bf16.xpose.msra.mxu0 0
    %1524 = vmatprep.subr.bf16.mxu0 0
    %1525 = vmatpush1.bf16.xpose.msra.mxu0 0
    %1526 = vmatprep.subr.bf16.mxu0 0
    %1527 = vmatpush1.bf16.xpose.msra.mxu0 0
    %1528 = vmatprep.subr.bf16.mxu0 0
    %1529 = vmatpush1.bf16.xpose.msra.mxu0 0
    %1530 = vmatprep.subr.bf16.mxu0 0
    %1531 = vmatpush1.bf16.xpose.msra.mxu0 0
    %1532 = vmatprep.subr.bf16.mxu0 0
    %1533 = vmatpush1.bf16.xpose.msra.mxu0 0
    %1534 = vmatprep.subr.bf16.mxu0 0
    %1535 = vmatpush1.bf16.xpose.msra.mxu0 0
    %1536 = vmatprep.subr.bf16.mxu0 0
    %1537 = vmatpush1.bf16.xpose.msra.mxu0 0
    %1538 = vmatprep.subr.bf16.mxu0 0
    %1539 = vmatpush1.bf16.xpose.msra.mxu0 0
    %1540 = vmatprep.subr.bf16.mxu0 0
    %1541 = vmatpush1.bf16.xpose.msra.mxu0 0
    %1542 = vmatprep.subr.bf16.mxu0 0
    %1543 = vmatpush1.bf16.xpose.msra.mxu0 0
    %1544 = vmatprep.subr.bf16.mxu0 0
    %1545 = vmatpush1.bf16.xpose.msra.mxu0 0
    %1546 = vmatprep.subr.bf16.mxu0 0
    %1547 = vmatpush1.bf16.xpose.msra.mxu0 0
    %1548 = vmatprep.mubr.bf16.mxu0 0
    %1549 = vmatmul.mubr.bf16.gmra.mrb[0].mxu0 %v1511
    %v1550 = vpop.f32.mrb[0].mxu0
    %v1551 = vadd.f32 0.0, %v1550
    %v1552 = vpop.f32.mrb[0].mxu0
    %v1553 = vpop.f32.mrb[0].mxu0
    %v1554 = vpop.f32.mrb[0].mxu0
    %1555 = vdwg.mxu0
    %v1557 = vsel %vm1095, %v713, 0
    %v1560 = vsel %vm1095, %v1278, 0
    %1562 = vmatprep.subr.bf16.mxu0 0
    %1563 = vmatpush1.bf16.xpose.msra.mxu0 %v1560
    %1564 = vmatprep.subr.bf16.mxu0 0
    %1565 = vmatpush1.bf16.xpose.msra.mxu0 0
    %1566 = vmatprep.subr.bf16.mxu0 0
    %1567 = vmatpush1.bf16.xpose.msra.mxu0 0
    %1568 = vmatprep.subr.bf16.mxu0 0
    %1569 = vmatpush1.bf16.xpose.msra.mxu0 0
    %1570 = vmatprep.subr.bf16.mxu0 0
    %1571 = vmatpush1.bf16.xpose.msra.mxu0 0
    %1572 = vmatprep.subr.bf16.mxu0 0
    %1573 = vmatpush1.bf16.xpose.msra.mxu0 0
    %1574 = vmatprep.subr.bf16.mxu0 0
    %1575 = vmatpush1.bf16.xpose.msra.mxu0 0
    %1576 = vmatprep.subr.bf16.mxu0 0
    %1577 = vmatpush1.bf16.xpose.msra.mxu0 0
    %1578 = vmatprep.subr.bf16.mxu0 0
    %1579 = vmatpush1.bf16.xpose.msra.mxu0 0
    %1580 = vmatprep.subr.bf16.mxu0 0
    %1581 = vmatpush1.bf16.xpose.msra.mxu0 0
    %1582 = vmatprep.subr.bf16.mxu0 0
    %1583 = vmatpush1.bf16.xpose.msra.mxu0 0
    %1584 = vmatprep.subr.bf16.mxu0 0
    %1585 = vmatpush1.bf16.xpose.msra.mxu0 0
    %1586 = vmatprep.subr.bf16.mxu0 0
    %1587 = vmatpush1.bf16.xpose.msra.mxu0 0
    %1588 = vmatprep.subr.bf16.mxu0 0
    %1589 = vmatpush1.bf16.xpose.msra.mxu0 0
    %1590 = vmatprep.subr.bf16.mxu0 0
    %1591 = vmatpush1.bf16.xpose.msra.mxu0 0
    %1592 = vmatprep.subr.bf16.mxu0 0
    %1593 = vmatpush1.bf16.xpose.msra.mxu0 0
    %1594 = vmatprep.mubr.bf16.mxu0 0
    %1595 = vmatmul.mubr.bf16.gmra.mrb[0].mxu0 %v1557
    %v1596 = vpop.f32.mrb[0].mxu0
    %v1597 = vadd.f32 0.0, %v1596
    %v1598 = vpop.f32.mrb[0].mxu0
    %v1599 = vpop.f32.mrb[0].mxu0
    %v1600 = vpop.f32.mrb[0].mxu0
    %1601 = vdwg.mxu0
    %v1603 = vsel %vm1095, %v714, 0
    %v1606 = vsel %vm1095, %v1279, 0
    %1608 = vmatprep.subr.bf16.mxu0 0
    %1609 = vmatpush1.bf16.xpose.msra.mxu0 %v1606
    %1610 = vmatprep.subr.bf16.mxu0 0
    %1611 = vmatpush1.bf16.xpose.msra.mxu0 0
    %1612 = vmatprep.subr.bf16.mxu0 0
    %1613 = vmatpush1.bf16.xpose.msra.mxu0 0
    %1614 = vmatprep.subr.bf16.mxu0 0
    %1615 = vmatpush1.bf16.xpose.msra.mxu0 0
    %1616 = vmatprep.subr.bf16.mxu0 0
    %1617 = vmatpush1.bf16.xpose.msra.mxu0 0
    %1618 = vmatprep.subr.bf16.mxu0 0
    %1619 = vmatpush1.bf16.xpose.msra.mxu0 0
    %1620 = vmatprep.subr.bf16.mxu0 0
    %1621 = vmatpush1.bf16.xpose.msra.mxu0 0
    %1622 = vmatprep.subr.bf16.mxu0 0
    %1623 = vmatpush1.bf16.xpose.msra.mxu0 0
    %1624 = vmatprep.subr.bf16.mxu0 0
    %1625 = vmatpush1.bf16.xpose.msra.mxu0 0
    %1626 = vmatprep.subr.bf16.mxu0 0
    %1627 = vmatpush1.bf16.xpose.msra.mxu0 0
    %1628 = vmatprep.subr.bf16.mxu0 0
    %1629 = vmatpush1.bf16.xpose.msra.mxu0 0
    %1630 = vmatprep.subr.bf16.mxu0 0
    %1631 = vmatpush1.bf16.xpose.msra.mxu0 0
    %1632 = vmatprep.subr.bf16.mxu0 0
    %1633 = vmatpush1.bf16.xpose.msra.mxu0 0
    %1634 = vmatprep.subr.bf16.mxu0 0
    %1635 = vmatpush1.bf16.xpose.msra.mxu0 0
    %1636 = vmatprep.subr.bf16.mxu0 0
    %1637 = vmatpush1.bf16.xpose.msra.mxu0 0
    %1638 = vmatprep.subr.bf16.mxu0 0
    %1639 = vmatpush1.bf16.xpose.msra.mxu0 0
    %1640 = vmatprep.mubr.bf16.mxu0 0
    %1641 = vmatmul.mubr.bf16.gmra.mrb[0].mxu0 %v1603
    %v1642 = vpop.f32.mrb[0].mxu0
    %v1643 = vadd.f32 0.0, %v1642
    %v1644 = vpop.f32.mrb[0].mxu0
    %v1645 = vpop.f32.mrb[0].mxu0
    %v1646 = vpop.f32.mrb[0].mxu0
    %1647 = vdwg.mxu0
    %v1648 = vpack.c.bf16 %v1367, %v1321
    %v1649 = vpack.c.bf16 %v1459, %v1413
    %v1650 = vpack.c.bf16 %v1551, %v1505
    %v1651 = vpack.c.bf16 %v1643, %v1597
    %v1652 = vld [vmem:[#allocation4] sm:$0xf]
    %v1653 = vld [vmem:[#allocation4 + $0x4] sm:$0xf]
    %v1654 = vld [vmem:[#allocation4 + $0x8] sm:$0xf]
    %v1655 = vld [vmem:[#allocation4 + $0xc] sm:$0xf]
    %v1656 = vld [vmem:[#allocation4 + $0x10] sm:$0xf]
    %v1657 = vld [vmem:[#allocation4 + $0x14] sm:$0xf]
    %v1658 = vld [vmem:[#allocation4 + $0x18] sm:$0xf]
    %v1659 = vld [vmem:[#allocation4 + $0x1c] sm:$0xf]
    %v1668 = vunpack.c.l.b16 %v1652
    %v1669 = vunpack.c.l.b16 %v1653
    %v1670 = vunpack.c.l.b16 %v1654
    %v1671 = vunpack.c.l.b16 %v1655
    %v1672 = vunpack.c.l.b16 %v1656
    %v1673 = vunpack.c.l.b16 %v1657
    %v1674 = vunpack.c.l.b16 %v1658
    %v1675 = vunpack.c.l.b16 %v1659
    %v1676 = vpack.c.b16 %v1669, %v1668
    %v1677 = vpack.c.b16 %v1671, %v1670
    %v1678 = vpack.c.b16 %v1673, %v1672
    %v1679 = vpack.c.b16 %v1675, %v1674
    %v1681 = vsel %vm123, %v1676, 0
    %v1684 = vsel %vm123, %v1677, 0
    %v1687 = vsel %vm123, %v1678, 0
    %v1690 = vsel %vm123, %v1679, 0
    %1692 = vmatprep.subr.bf16.mxu0 0
    %1693 = vmatpush1.bf16.msra.mxu0 %v1648
    %1694 = vmatprep.subr.bf16.mxu0 0
    %1695 = vmatpush1.bf16.msra.mxu0 %v1649
    %1696 = vmatprep.subr.bf16.mxu0 0
    %1697 = vmatpush1.bf16.msra.mxu0 %v1650
    %1698 = vmatprep.subr.bf16.mxu0 0
    %1699 = vmatpush1.bf16.msra.mxu0 %v1651
    %1700 = vmatprep.subr.bf16.mxu0 0
    %1701 = vmatpush1.bf16.msra.mxu0 0
    %1702 = vmatprep.subr.bf16.mxu0 0
    %1703 = vmatpush1.bf16.msra.mxu0 0
    %1704 = vmatprep.subr.bf16.mxu0 0
    %1705 = vmatpush1.bf16.msra.mxu0 0
    %1706 = vmatprep.subr.bf16.mxu0 0
    %1707 = vmatpush1.bf16.msra.mxu0 0
    %1708 = vmatprep.subr.bf16.mxu0 0
    %1709 = vmatpush1.bf16.msra.mxu0 0
    %1710 = vmatprep.subr.bf16.mxu0 0
    %1711 = vmatpush1.bf16.msra.mxu0 0
    %1712 = vmatprep.subr.bf16.mxu0 0
    %1713 = vmatpush1.bf16.msra.mxu0 0
    %1714 = vmatprep.subr.bf16.mxu0 0
    %1715 = vmatpush1.bf16.msra.mxu0 0
    %1716 = vmatprep.subr.bf16.mxu0 0
    %1717 = vmatpush1.bf16.msra.mxu0 0
    %1718 = vmatprep.subr.bf16.mxu0 0
    %1719 = vmatpush1.bf16.msra.mxu0 0
    %1720 = vmatprep.subr.bf16.mxu0 0
    %1721 = vmatpush1.bf16.msra.mxu0 0
    %1722 = vmatprep.subr.bf16.mxu0 0
    %1723 = vmatpush1.bf16.msra.mxu0 0
    %1724 = vmatprep.mubr.bf16.mxu0 0
    %1725 = vmatmul.mubr.bf16.gmra.mrb[0].mxu0 %v1681
    %v1726 = vpop.f32.mrb[0].mxu0
    %v1727 = vadd.f32 0.0, %v1726
    %v1728 = vpop.f32.mrb[0].mxu0
    %v1729 = vpop.f32.mrb[0].mxu0
    %v1730 = vadd.f32 0.0, %v1729
    %v1731 = vpop.f32.mrb[0].mxu0
    %1732 = vmatprep.mubr.bf16.mxu0 0
    %1733 = vmatmul.mubr.bf16.gmra.mrb[0].mxu0 %v1684
    %v1734 = vpop.f32.mrb[0].mxu0
    %v1735 = vadd.f32 0.0, %v1734
    %v1736 = vpop.f32.mrb[0].mxu0
    %v1737 = vpop.f32.mrb[0].mxu0
    %v1738 = vadd.f32 0.0, %v1737
    %v1739 = vpop.f32.mrb[0].mxu0
    %1740 = vmatprep.mubr.bf16.mxu0 0
    %1741 = vmatmul.mubr.bf16.gmra.mrb[0].mxu0 %v1687
    %v1742 = vpop.f32.mrb[0].mxu0
    %v1743 = vadd.f32 0.0, %v1742
    %v1744 = vpop.f32.mrb[0].mxu0
    %v1745 = vpop.f32.mrb[0].mxu0
    %v1746 = vadd.f32 0.0, %v1745
    %v1747 = vpop.f32.mrb[0].mxu0
    %1748 = vmatprep.mubr.bf16.mxu0 0
    %1749 = vmatmul.mubr.bf16.gmra.mrb[0].mxu0 %v1690
    %v1750 = vpop.f32.mrb[0].mxu0
    %v1751 = vadd.f32 0.0, %v1750
    %v1752 = vpop.f32.mrb[0].mxu0
    %v1753 = vpop.f32.mrb[0].mxu0
    %v1754 = vadd.f32 0.0, %v1753
    %v1755 = vpop.f32.mrb[0].mxu0
    %1756 = vdwg.mxu0
    %1757 = vst.msk [vmem:[%s7] sm:$0xff] %vm1095, %v1727
    %1758 = vst.msk [vmem:[%s7 + $0x8] sm:$0xff] %vm1095, %v1730
    %1759 = vst.msk [vmem:[%s7 + $0x10] sm:$0xff] %vm1095, %v1735
    %1760 = vst.msk [vmem:[%s7 + $0x18] sm:$0xff] %vm1095, %v1738
    %1761 = vst.msk [vmem:[%s7 + $0x20] sm:$0xff] %vm1095, %v1743
    %1762 = vst.msk [vmem:[%s7 + $0x28] sm:$0xff] %vm1095, %v1746
    %1763 = vst.msk [vmem:[%s7 + $0x30] sm:$0xff] %vm1095, %v1751
    %1764 = vst.msk [vmem:[%s7 + $0x38] sm:$0xff] %vm1095, %v1754
    // Predicated region
    $region38: #{tpu_custom_call.1} parent=1 // pred_check
      _
    $region39: #{tpu_custom_call.1} parent=1 // pred_check_branch
      %1766 = sbr.rel (0) target = $region41
    $region40: #{tpu_custom_call.1} parent=1 // pred_region
      _
    $region41: #{tpu_custom_call.1} parent=1 // pred_fallthru
      _
    // Predicated region
    $region42: #{tpu_custom_call.1} parent=1 // pred_check
      _
    $region43: #{tpu_custom_call.1} parent=1 // pred_check_branch
      %1768 = sbr.rel (0) target = $region45
    $region44: #{tpu_custom_call.1} parent=1 // pred_region
      _
    $region45: #{tpu_custom_call.1} parent=1 // pred_fallthru
      _
    %1769 = vsyncpa [#allocation3], 1
    %1770 = vsyncpa [#allocation5], 1

</llo_original>
